<compile_context>
chip_gen: v5e
topology: v5e:2x2
jax: 0.10.0
libtpu: 0.0.40
codegen_flags: <defaults>
</compile_context>

<pallas_src>
import jax
import jax.numpy as jnp
from jax.experimental import pallas as pl
from jax.experimental.pallas import tpu as pltpu


# Explicit matmul precision (review: "pick one deliberately").
# HIGHEST  -> multi-pass f32 on the MXU: bit-parity with PyTorch f32, exact
#             one-hot gather.  DEFAULT -> single-pass bf16, ~3x faster per
#             step on the serial chain, ~1e-3 accuracy.
_PREC = jax.lax.Precision.HIGHEST

_OUT_PAD = 128   # lane-dense output store; logits live in [:, :3]
_NUM_CLASSES = 3


def rnn_classifier_kernel(
    ids_ref,     # VMEM (seq_len, 1)      int32  token ids (pre-clamped)
    proj_ref,    # VMEM (V_pad, hid)      f32    emb @ W_ih^T + (b_ih+b_hh), zero-padded rows
    whh_ref,     # VMEM (hid, hid)        f32    W_hh^T
    wout_ref,    # VMEM (hid, _OUT_PAD)   f32    W_out^T zero-padded lanes
    bout_ref,    # VMEM (1, _OUT_PAD)     f32    b_out zero-padded lanes
    o_ref,       # VMEM (1, _OUT_PAD)     f32    padded logits
):
    seq_len = ids_ref.shape[0]
    v_pad = proj_ref.shape[0]

    # ---- Gather-as-matmul: one (seq_len, V_pad) @ (V_pad, hid) MXU call. ----
    # One-hot rows are exactly representable, so at HIGHEST precision the
    # selected proj rows come out bit-exact (no bf16 loss, no dynamic vst).
    iota = jax.lax.broadcasted_iota(jnp.int32, (seq_len, v_pad), 1)
    onehot = (iota == ids_ref[...]).astype(jnp.float32)          # (seq_len, V_pad)
    xw = jnp.dot(onehot, proj_ref[...],
                 preferred_element_type=jnp.float32,
                 precision=_PREC)                                # (seq_len, hid)

    # ---- Hoist per-step row extraction off the serial critical path. ----
    xw_rows = [xw[t:t + 1, :] for t in range(seq_len)]

    # ---- Fully-unrolled tanh recurrence; weights loaded once. ----
    # h_0 = 0  =>  h_1 = tanh(xw_0): skip the useless first h@W_hh matmul.
    # (An alternative VPU/XLU formulation of h@W_hh exists; keep the MXU path
    #  here — per-step (1,hid)@(hid,hid) ran cleanly and hid=32 is tiny.)
    w_hh = whh_ref[...]
    h = jnp.tanh(xw_rows[0])
    for t in range(1, seq_len):
        h = jnp.tanh(
            xw_rows[t]
            + jnp.dot(h, w_hh, preferred_element_type=jnp.float32,
                      precision=_PREC)
        )

    # ---- Final linear on the last hidden state -> lane-dense (1, 128). ----
    o_ref[...] = (
        jnp.dot(h, wout_ref[...], preferred_element_type=jnp.float32,
                precision=_PREC)
        + bout_ref[...]
    )


def prepare_kernel_params(params):
    """One-time (per set of weights) fusion/padding of parameters."""
    emb = params["embedding"].astype(jnp.float32)        # (V, in_dim)
    voca_size, _ = emb.shape
    hid = params["w_hh_t"].shape[0]

    # Hoisted time-independent projection table: (V, hid).
    proj = jnp.dot(emb, params["w_ih_t"], precision=_PREC) + params["b"]
    v_pad = pl.cdiv(voca_size, 128) * 128
    proj_pad = jnp.zeros((v_pad, hid), jnp.float32).at[:voca_size, :].set(proj)

    wout_pad = (
        jnp.zeros((hid, _OUT_PAD), jnp.float32).at[:, :_NUM_CLASSES]
        .set(params["w_out_t"])
    )
    bout_pad = (
        jnp.zeros((1, _OUT_PAD), jnp.float32).at[:, :_NUM_CLASSES]
        .set(params["b_out"])
    )

    return {
        "proj_pad": proj_pad,
        "w_hh_t": params["w_hh_t"].astype(jnp.float32),
        "wout_pad": wout_pad,
        "bout_pad": bout_pad,
        "voca_size": int(voca_size),
    }


def classifier_forward(words, kparams):
    """Mirror of Classifier.forward(words): returns (1, 3) logits."""
    seq_len = words.shape[0]
    # Clamp ids so untrusted inputs can never select a padded/OOB row.
    ids = jnp.clip(words.astype(jnp.int32), 0, kparams["voca_size"] - 1)
    ids = ids.reshape(seq_len, 1)

    out = pl.pallas_call(
        rnn_classifier_kernel,
        out_shape=jax.ShapeDtypeStruct((1, _OUT_PAD), jnp.float32),
        in_specs=[
            pl.BlockSpec(memory_space=pltpu.MemorySpace.VMEM),   # ids
            pl.BlockSpec(memory_space=pltpu.MemorySpace.VMEM),   # proj (fused)
            pl.BlockSpec(memory_space=pltpu.MemorySpace.VMEM),   # W_hh^T
            pl.BlockSpec(memory_space=pltpu.MemorySpace.VMEM),   # W_out^T (padded)
            pl.BlockSpec(memory_space=pltpu.MemorySpace.VMEM),   # b_out (padded)
        ],
        out_specs=pl.BlockSpec(memory_space=pltpu.MemorySpace.VMEM),
    )(ids, kparams["proj_pad"], kparams["w_hh_t"],
      kparams["wout_pad"], kparams["bout_pad"])

    return out[:, :_NUM_CLASSES]


def init_params(key, voca_size, rnn_in_dim, rnn_hid_dim):
    """Deterministic synthetic parameters (shapes match the PyTorch module)."""
    k_emb, k_ih, k_hh, k_bih, k_bhh, k_out, k_bout = jax.random.split(key, 7)
    bound_rnn = 1.0 / jnp.sqrt(rnn_hid_dim)
    bound_out = 1.0 / jnp.sqrt(rnn_hid_dim)
    params = {
        # nn.Embedding(voca_size, rnn_in_dim): N(0, 1)
        "embedding": jax.random.normal(k_emb, (voca_size, rnn_in_dim), jnp.float32),
        # nn.RNN weights (stored pre-transposed for row-vector matmuls)
        "w_ih_t": jax.random.uniform(
            k_ih, (rnn_in_dim, rnn_hid_dim), jnp.float32, -bound_rnn, bound_rnn
        ),
        "w_hh_t": jax.random.uniform(
            k_hh, (rnn_hid_dim, rnn_hid_dim), jnp.float32, -bound_rnn, bound_rnn
        ),
        "b": (
            jax.random.uniform(k_bih, (1, rnn_hid_dim), jnp.float32, -bound_rnn, bound_rnn)
            + jax.random.uniform(k_bhh, (1, rnn_hid_dim), jnp.float32, -bound_rnn, bound_rnn)
        ),
        # nn.Linear(rnn_hid_dim, 3)
        "w_out_t": jax.random.uniform(
            k_out, (rnn_hid_dim, 3), jnp.float32, -bound_out, bound_out
        ),
        "b_out": jax.random.uniform(k_bout, (1, 3), jnp.float32, -bound_out, bound_out),
    }
    return params


def reference_forward(words, params):
    """Pure-JAX reference matching PyTorch nn.RNN float32 semantics."""
    x = jnp.take(params["embedding"].astype(jnp.float32), words, axis=0)

    def step(h, x_t):
        h_new = jnp.tanh(
            jnp.dot(x_t[None, :], params["w_ih_t"], precision=_PREC)
            + jnp.dot(h, params["w_hh_t"], precision=_PREC)
            + params["b"]
        )
        return h_new, None

    h0 = jnp.zeros((1, params["w_hh_t"].shape[0]), jnp.float32)
    h_last, _ = jax.lax.scan(step, h0, x)
    return jnp.dot(h_last, params["w_out_t"], precision=_PREC) + params["b_out"]


if __name__ == "__main__":
    voca_size = 50
    rnn_in_dim = 32
    rnn_hid_dim = 32
    seq_len = 8

    key = jax.random.PRNGKey(0)
    k_params, k_words = jax.random.split(key)
    params = init_params(k_params, voca_size, rnn_in_dim, rnn_hid_dim)
    words = jax.random.randint(k_words, (seq_len,), 0, voca_size, dtype=jnp.int32)

    kparams = prepare_kernel_params(params)   # one-time weight fusion/padding

    logits = classifier_forward(words, kparams)
    logits = jax.block_until_ready(logits)

    ref = jax.block_until_ready(reference_forward(words, params))
    assert logits.shape == (1, 3)
    assert jnp.allclose(logits, ref, atol=1e-5, rtol=1e-5)

    print("KERNEL_OK")
</pallas_src>

<mosaic_0001>
module attributes {stable_mosaic.version = 11 : i64} {
  func.func @rnn_classifier_kernel(%arg0: memref<8x1xi32, #tpu.memory_space<vmem>>, %arg1: memref<128x32xf32, #tpu.memory_space<vmem>>, %arg2: memref<32x32xf32, #tpu.memory_space<vmem>>, %arg3: memref<32x128xf32, #tpu.memory_space<vmem>>, %arg4: memref<1x128xf32, #tpu.memory_space<vmem>>, %arg5: memref<1x128xf32, #tpu.memory_space<vmem>>) attributes {dimension_semantics = [], scalar_prefetch = 0 : i64, scratch_operands = 0 : i64, tpu.core_type = #tpu.core_type<tc>} {
    %0 = tpu.iota {dimensions = array<i32: 1>} : vector<8x128xi32>
    %c0 = arith.constant 0 : index
    %c0_0 = arith.constant 0 : index
    %1 = vector.load %arg0[%c0, %c0_0] : memref<8x1xi32, #tpu.memory_space<vmem>>, vector<8x1xi32>
    %2 = vector.broadcast %1 : vector<8x1xi32> to vector<8x128xi32>
    %3 = arith.cmpi eq, %0, %2 : vector<8x128xi32>
    %4 = arith.extui %3 : vector<8x128xi1> to vector<8x128xi32>
    %5 = arith.sitofp %4 : vector<8x128xi32> to vector<8x128xf32>
    %c0_1 = arith.constant 0 : index
    %c0_2 = arith.constant 0 : index
    %6 = vector.load %arg1[%c0_1, %c0_2] : memref<128x32xf32, #tpu.memory_space<vmem>>, vector<128x32xf32>
    %cst = arith.constant dense<0.000000e+00> : vector<8x32xf32>
    %7 = tpu.matmul %5, %6, %cst {dimension_numbers = #tpu.dot_dimension_numbers<[1], [0], [0], [1], [0, 0, 1, 1], [], []>, precision = #tpu.contract_precision<fp32>} : vector<8x128xf32>, vector<128x32xf32>, vector<8x32xf32> -> vector<8x32xf32>
    %8 = vector.extract_strided_slice %7 {offsets = [0, 0], sizes = [1, 32], strides = [1, 1]} : vector<8x32xf32> to vector<1x32xf32>
    %9 = vector.extract_strided_slice %7 {offsets = [1, 0], sizes = [1, 32], strides = [1, 1]} : vector<8x32xf32> to vector<1x32xf32>
    %10 = vector.extract_strided_slice %7 {offsets = [2, 0], sizes = [1, 32], strides = [1, 1]} : vector<8x32xf32> to vector<1x32xf32>
    %11 = vector.extract_strided_slice %7 {offsets = [3, 0], sizes = [1, 32], strides = [1, 1]} : vector<8x32xf32> to vector<1x32xf32>
    %12 = vector.extract_strided_slice %7 {offsets = [4, 0], sizes = [1, 32], strides = [1, 1]} : vector<8x32xf32> to vector<1x32xf32>
    %13 = vector.extract_strided_slice %7 {offsets = [5, 0], sizes = [1, 32], strides = [1, 1]} : vector<8x32xf32> to vector<1x32xf32>
    %14 = vector.extract_strided_slice %7 {offsets = [6, 0], sizes = [1, 32], strides = [1, 1]} : vector<8x32xf32> to vector<1x32xf32>
    %15 = vector.extract_strided_slice %7 {offsets = [7, 0], sizes = [1, 32], strides = [1, 1]} : vector<8x32xf32> to vector<1x32xf32>
    %c0_3 = arith.constant 0 : index
    %c0_4 = arith.constant 0 : index
    %16 = vector.load %arg2[%c0_3, %c0_4] : memref<32x32xf32, #tpu.memory_space<vmem>>, vector<32x32xf32>
    %17 = math.tanh %8 : vector<1x32xf32>
    %cst_5 = arith.constant dense<0.000000e+00> : vector<1x32xf32>
    %18 = tpu.matmul %17, %16, %cst_5 {dimension_numbers = #tpu.dot_dimension_numbers<[1], [0], [0], [1], [0, 0, 1, 1], [], []>, precision = #tpu.contract_precision<fp32>} : vector<1x32xf32>, vector<32x32xf32>, vector<1x32xf32> -> vector<1x32xf32>
    %19 = arith.addf %9, %18 : vector<1x32xf32>
    %20 = math.tanh %19 : vector<1x32xf32>
    %cst_6 = arith.constant dense<0.000000e+00> : vector<1x32xf32>
    %21 = tpu.matmul %20, %16, %cst_6 {dimension_numbers = #tpu.dot_dimension_numbers<[1], [0], [0], [1], [0, 0, 1, 1], [], []>, precision = #tpu.contract_precision<fp32>} : vector<1x32xf32>, vector<32x32xf32>, vector<1x32xf32> -> vector<1x32xf32>
    %22 = arith.addf %10, %21 : vector<1x32xf32>
    %23 = math.tanh %22 : vector<1x32xf32>
    %cst_7 = arith.constant dense<0.000000e+00> : vector<1x32xf32>
    %24 = tpu.matmul %23, %16, %cst_7 {dimension_numbers = #tpu.dot_dimension_numbers<[1], [0], [0], [1], [0, 0, 1, 1], [], []>, precision = #tpu.contract_precision<fp32>} : vector<1x32xf32>, vector<32x32xf32>, vector<1x32xf32> -> vector<1x32xf32>
    %25 = arith.addf %11, %24 : vector<1x32xf32>
    %26 = math.tanh %25 : vector<1x32xf32>
    %cst_8 = arith.constant dense<0.000000e+00> : vector<1x32xf32>
    %27 = tpu.matmul %26, %16, %cst_8 {dimension_numbers = #tpu.dot_dimension_numbers<[1], [0], [0], [1], [0, 0, 1, 1], [], []>, precision = #tpu.contract_precision<fp32>} : vector<1x32xf32>, vector<32x32xf32>, vector<1x32xf32> -> vector<1x32xf32>
    %28 = arith.addf %12, %27 : vector<1x32xf32>
    %29 = math.tanh %28 : vector<1x32xf32>
    %cst_9 = arith.constant dense<0.000000e+00> : vector<1x32xf32>
    %30 = tpu.matmul %29, %16, %cst_9 {dimension_numbers = #tpu.dot_dimension_numbers<[1], [0], [0], [1], [0, 0, 1, 1], [], []>, precision = #tpu.contract_precision<fp32>} : vector<1x32xf32>, vector<32x32xf32>, vector<1x32xf32> -> vector<1x32xf32>
    %31 = arith.addf %13, %30 : vector<1x32xf32>
    %32 = math.tanh %31 : vector<1x32xf32>
    %cst_10 = arith.constant dense<0.000000e+00> : vector<1x32xf32>
    %33 = tpu.matmul %32, %16, %cst_10 {dimension_numbers = #tpu.dot_dimension_numbers<[1], [0], [0], [1], [0, 0, 1, 1], [], []>, precision = #tpu.contract_precision<fp32>} : vector<1x32xf32>, vector<32x32xf32>, vector<1x32xf32> -> vector<1x32xf32>
    %34 = arith.addf %14, %33 : vector<1x32xf32>
    %35 = math.tanh %34 : vector<1x32xf32>
    %cst_11 = arith.constant dense<0.000000e+00> : vector<1x32xf32>
    %36 = tpu.matmul %35, %16, %cst_11 {dimension_numbers = #tpu.dot_dimension_numbers<[1], [0], [0], [1], [0, 0, 1, 1], [], []>, precision = #tpu.contract_precision<fp32>} : vector<1x32xf32>, vector<32x32xf32>, vector<1x32xf32> -> vector<1x32xf32>
    %37 = arith.addf %15, %36 : vector<1x32xf32>
    %38 = math.tanh %37 : vector<1x32xf32>
    %c0_12 = arith.constant 0 : index
    %c0_13 = arith.constant 0 : index
    %39 = vector.load %arg3[%c0_12, %c0_13] : memref<32x128xf32, #tpu.memory_space<vmem>>, vector<32x128xf32>
    %cst_14 = arith.constant dense<0.000000e+00> : vector<1x128xf32>
    %40 = tpu.matmul %38, %39, %cst_14 {dimension_numbers = #tpu.dot_dimension_numbers<[1], [0], [0], [1], [0, 0, 1, 1], [], []>, precision = #tpu.contract_precision<fp32>} : vector<1x32xf32>, vector<32x128xf32>, vector<1x128xf32> -> vector<1x128xf32>
    %c0_15 = arith.constant 0 : index
    %c0_16 = arith.constant 0 : index
    %41 = vector.load %arg4[%c0_15, %c0_16] : memref<1x128xf32, #tpu.memory_space<vmem>>, vector<1x128xf32>
    %42 = arith.addf %40, %41 : vector<1x128xf32>
    %c0_17 = arith.constant 0 : index
    %c0_18 = arith.constant 0 : index
    %43 = vector.load %arg5[%c0_17, %c0_18] : memref<1x128xf32, #tpu.memory_space<vmem>>, vector<1x128xf32>
    tpu.vector_store %arg5[%c0_17, %c0_18], %42 {strides = array<i32>} : memref<1x128xf32, #tpu.memory_space<vmem>>, vector<1x128xf32>,
    return
  }
}

</mosaic_0001>

<llo_original>
// kernel: tpu_custom_call.1
$region0: #{tpu_custom_call.1}
  #allocation0 [shape = 'u32[]', space=smem, size = 0x4, offset = 0x4, fixed_abs, tag = 'smem constant byte address 0x4 - core index']
  #allocation1 [shape = 'u32[72,128]{1,0:T(1,128)}', space=vmem, size = 0x9000, scoped, tag = 'internal scratch']
  %s0 = inlined_call_operand.vmem [shape: s32[8,1], index: 0, kind: input, shape index: {}]
  %s1 = inlined_call_operand.vmem [shape: f32[128,32], index: 1, kind: input, shape index: {}]
  %s2 = inlined_call_operand.vmem [shape: f32[32,32], index: 2, kind: input, shape index: {}]
  %s3 = inlined_call_operand.vmem [shape: f32[32,128], index: 3, kind: input, shape index: {}]
  %s4 = inlined_call_operand.vmem [shape: f32[1,128], index: 4, kind: input, shape index: {}]
  %s5 = inlined_call_operand.hbm [shape: f32[1,128], index: 5, kind: output, shape index: {}]
  %s6 = sld [smem:[#allocation0]]
  $region30: #{tpu_custom_call.1} parent=0
    _
  %s8 = ssub.s32 1, %s6
  %s9 = scalar_select 0, %s8, %s6
  $region1: #{tpu_custom_call.1} parent=0
    #allocation2 [shape = 'u8[512]{0}', space=vmem, size = 0x400, scoped, tag = 'output window, operand 0, single buffered']
    #allocation3 [shape = 's32[1]{0}', space=sflag, size = 0x4, scoped, tag = 'scoped memory for tpu_custom_call.1']
    %10 = vsyncpa [#allocation3], 0
    // Predicated region
    $region2: #{tpu_custom_call.1} parent=1 // pred_check
      _
    $region3: #{tpu_custom_call.1} parent=1 // pred_check_branch
      %12 = sbr.rel (0) target = $region5
    $region4: #{tpu_custom_call.1} parent=1 // pred_region
      _
    $region5: #{tpu_custom_call.1} parent=1 // pred_fallthru
      _
    // Predicated region
    $region6: #{tpu_custom_call.1} parent=1 // pred_check
      _
    $region7: #{tpu_custom_call.1} parent=1 // pred_check_branch
      %14 = sbr.rel (0) target = $region9
    $region8: #{tpu_custom_call.1} parent=1 // pred_region
      _
    $region9: #{tpu_custom_call.1} parent=1 // pred_fallthru
      _
    // Predicated region
    $region10: #{tpu_custom_call.1} parent=1 // pred_check
      _
    $region11: #{tpu_custom_call.1} parent=1 // pred_check_branch
      %16 = sbr.rel (0) target = $region13
    $region12: #{tpu_custom_call.1} parent=1 // pred_region
      _
    $region13: #{tpu_custom_call.1} parent=1 // pred_fallthru
      _
    // Predicated region
    $region14: #{tpu_custom_call.1} parent=1 // pred_check
      _
    $region15: #{tpu_custom_call.1} parent=1 // pred_check_branch
      %18 = sbr.rel (0) target = $region17
    $region16: #{tpu_custom_call.1} parent=1 // pred_region
      _
    $region17: #{tpu_custom_call.1} parent=1 // pred_fallthru
      _
    // Predicated region
    $region18: #{tpu_custom_call.1} parent=1 // pred_check
      _
    $region19: #{tpu_custom_call.1} parent=1 // pred_check_branch
      %20 = sbr.rel (0) target = $region21
    $region20: #{tpu_custom_call.1} parent=1 // pred_region
      _
    $region21: #{tpu_custom_call.1} parent=1 // pred_fallthru
      _
    %v21 = vlaneseq
    %v22 = vand.u32 %v21, 127
    %v23 = vld [vmem:[%s0] sm:$0xff]
    %24 = vset.pattern.permute.xlu0 0
    %25 = vperm.xlu0 %24, %v23
    %v26 = vpop.permute.xlu0 %25
    %vm27 = vcmp.eq.s32.totalorder %v22, %v26
    %v28 = vsel %vm27, 1, 0
    %v29 = vcvt.s32.f32 %v28
    %v30 = vld [vmem:[%s1] sm:$0xff]
    %v31 = vld [vmem:[%s1 + $0x8] sm:$0xff]
    %v32 = vld [vmem:[%s1 + $0x10] sm:$0xff]
    %v33 = vld [vmem:[%s1 + $0x18] sm:$0xff]
    %v34 = vld [vmem:[%s1 + $0x20] sm:$0xff]
    %v35 = vld [vmem:[%s1 + $0x28] sm:$0xff]
    %v36 = vld [vmem:[%s1 + $0x30] sm:$0xff]
    %v37 = vld [vmem:[%s1 + $0x38] sm:$0xff]
    %v38 = vld [vmem:[%s1 + $0x40] sm:$0xff]
    %v39 = vld [vmem:[%s1 + $0x48] sm:$0xff]
    %v40 = vld [vmem:[%s1 + $0x50] sm:$0xff]
    %v41 = vld [vmem:[%s1 + $0x58] sm:$0xff]
    %v42 = vld [vmem:[%s1 + $0x60] sm:$0xff]
    %v43 = vld [vmem:[%s1 + $0x68] sm:$0xff]
    %v44 = vld [vmem:[%s1 + $0x70] sm:$0xff]
    %v45 = vld [vmem:[%s1 + $0x78] sm:$0xff]
    %v46 = vand.u32 %v45, 4294901760
    %47 = vmatpush.msra.mxu0 %v46
    %v48 = vand.u32 %v44, 4294901760
    %49 = vmatpush.msra.mxu0 %v48
    %v50 = vand.u32 %v43, 4294901760
    %51 = vmatpush.msra.mxu0 %v50
    %v52 = vand.u32 %v42, 4294901760
    %53 = vmatpush.msra.mxu0 %v52
    %v54 = vand.u32 %v41, 4294901760
    %55 = vmatpush.msra.mxu0 %v54
    %v56 = vand.u32 %v40, 4294901760
    %57 = vmatpush.msra.mxu0 %v56
    %v58 = vand.u32 %v39, 4294901760
    %59 = vmatpush.msra.mxu0 %v58
    %v60 = vand.u32 %v38, 4294901760
    %61 = vmatpush.msra.mxu0 %v60
    %v62 = vand.u32 %v37, 4294901760
    %63 = vmatpush.msra.mxu0 %v62
    %v64 = vand.u32 %v36, 4294901760
    %65 = vmatpush.msra.mxu0 %v64
    %v66 = vand.u32 %v35, 4294901760
    %67 = vmatpush.msra.mxu0 %v66
    %v68 = vand.u32 %v34, 4294901760
    %69 = vmatpush.msra.mxu0 %v68
    %v70 = vand.u32 %v33, 4294901760
    %71 = vmatpush.msra.mxu0 %v70
    %v72 = vand.u32 %v32, 4294901760
    %73 = vmatpush.msra.mxu0 %v72
    %v74 = vand.u32 %v31, 4294901760
    %75 = vmatpush.msra.mxu0 %v74
    %v76 = vand.u32 %v30, 4294901760
    %77 = vmatpush.msra.mxu0 %v76
    %v78 = vand.u32 %v29, 4294901760
    %v79 = vsub.f32 %v29, %v78
    %v80 = vand.u32 %v79, 4294901760
    %v81 = vsub.f32 %v79, %v80
    %v82 = vand.u32 %v81, 4294901760
    %83 = vmatmul.f32.gmra.mxu0 %v82
    %v84 = vpop.f32.mrf.mxu0
    %v85 = vadd.f32 0.0, %v84
    %86 = vdwg.mxu0
    %v87 = vand.u32 %v45, 4294901760
    %v88 = vsub.f32 %v45, %v87
    %v89 = vand.u32 %v88, 4294901760
    %v90 = vsub.f32 %v88, %v89
    %v91 = vand.u32 %v90, 4294901760
    %92 = vmatpush.msra.mxu0 %v91
    %v93 = vand.u32 %v44, 4294901760
    %v94 = vsub.f32 %v44, %v93
    %v95 = vand.u32 %v94, 4294901760
    %v96 = vsub.f32 %v94, %v95
    %v97 = vand.u32 %v96, 4294901760
    %98 = vmatpush.msra.mxu0 %v97
    %v99 = vand.u32 %v43, 4294901760
    %v100 = vsub.f32 %v43, %v99
    %v101 = vand.u32 %v100, 4294901760
    %v102 = vsub.f32 %v100, %v101
    %v103 = vand.u32 %v102, 4294901760
    %104 = vmatpush.msra.mxu0 %v103
    %v105 = vand.u32 %v42, 4294901760
    %v106 = vsub.f32 %v42, %v105
    %v107 = vand.u32 %v106, 4294901760
    %v108 = vsub.f32 %v106, %v107
    %v109 = vand.u32 %v108, 4294901760
    %110 = vmatpush.msra.mxu0 %v109
    %v111 = vand.u32 %v41, 4294901760
    %v112 = vsub.f32 %v41, %v111
    %v113 = vand.u32 %v112, 4294901760
    %v114 = vsub.f32 %v112, %v113
    %v115 = vand.u32 %v114, 4294901760
    %116 = vmatpush.msra.mxu0 %v115
    %v117 = vand.u32 %v40, 4294901760
    %v118 = vsub.f32 %v40, %v117
    %v119 = vand.u32 %v118, 4294901760
    %v120 = vsub.f32 %v118, %v119
    %v121 = vand.u32 %v120, 4294901760
    %122 = vmatpush.msra.mxu0 %v121
    %v123 = vand.u32 %v39, 4294901760
    %v124 = vsub.f32 %v39, %v123
    %v125 = vand.u32 %v124, 4294901760
    %v126 = vsub.f32 %v124, %v125
    %v127 = vand.u32 %v126, 4294901760
    %128 = vmatpush.msra.mxu0 %v127
    %v129 = vand.u32 %v38, 4294901760
    %v130 = vsub.f32 %v38, %v129
    %v131 = vand.u32 %v130, 4294901760
    %v132 = vsub.f32 %v130, %v131
    %v133 = vand.u32 %v132, 4294901760
    %134 = vmatpush.msra.mxu0 %v133
    %v135 = vand.u32 %v37, 4294901760
    %v136 = vsub.f32 %v37, %v135
    %v137 = vand.u32 %v136, 4294901760
    %v138 = vsub.f32 %v136, %v137
    %v139 = vand.u32 %v138, 4294901760
    %140 = vmatpush.msra.mxu0 %v139
    %v141 = vand.u32 %v36, 4294901760
    %v142 = vsub.f32 %v36, %v141
    %v143 = vand.u32 %v142, 4294901760
    %v144 = vsub.f32 %v142, %v143
    %v145 = vand.u32 %v144, 4294901760
    %146 = vmatpush.msra.mxu0 %v145
    %v147 = vand.u32 %v35, 4294901760
    %v148 = vsub.f32 %v35, %v147
    %v149 = vand.u32 %v148, 4294901760
    %v150 = vsub.f32 %v148, %v149
    %v151 = vand.u32 %v150, 4294901760
    %152 = vmatpush.msra.mxu0 %v151
    %v153 = vand.u32 %v34, 4294901760
    %v154 = vsub.f32 %v34, %v153
    %v155 = vand.u32 %v154, 4294901760
    %v156 = vsub.f32 %v154, %v155
    %v157 = vand.u32 %v156, 4294901760
    %158 = vmatpush.msra.mxu0 %v157
    %v159 = vand.u32 %v33, 4294901760
    %v160 = vsub.f32 %v33, %v159
    %v161 = vand.u32 %v160, 4294901760
    %v162 = vsub.f32 %v160, %v161
    %v163 = vand.u32 %v162, 4294901760
    %164 = vmatpush.msra.mxu0 %v163
    %v165 = vand.u32 %v32, 4294901760
    %v166 = vsub.f32 %v32, %v165
    %v167 = vand.u32 %v166, 4294901760
    %v168 = vsub.f32 %v166, %v167
    %v169 = vand.u32 %v168, 4294901760
    %170 = vmatpush.msra.mxu0 %v169
    %v171 = vand.u32 %v31, 4294901760
    %v172 = vsub.f32 %v31, %v171
    %v173 = vand.u32 %v172, 4294901760
    %v174 = vsub.f32 %v172, %v173
    %v175 = vand.u32 %v174, 4294901760
    %176 = vmatpush.msra.mxu0 %v175
    %v177 = vand.u32 %v30, 4294901760
    %v178 = vsub.f32 %v30, %v177
    %v179 = vand.u32 %v178, 4294901760
    %v180 = vsub.f32 %v178, %v179
    %v181 = vand.u32 %v180, 4294901760
    %182 = vmatpush.msra.mxu0 %v181
    %v183 = vand.u32 %v29, 4294901760
    %184 = vmatmul.f32.gmra.mxu0 %v183
    %v185 = vpop.f32.mrf.mxu0
    %v186 = vadd.f32 %v85, %v185
    %187 = vdwg.mxu0
    %v188 = vand.u32 %v45, 4294901760
    %v189 = vsub.f32 %v45, %v188
    %190 = vmatpush.msra.mxu0 %v189
    %v191 = vand.u32 %v44, 4294901760
    %v192 = vsub.f32 %v44, %v191
    %193 = vmatpush.msra.mxu0 %v192
    %v194 = vand.u32 %v43, 4294901760
    %v195 = vsub.f32 %v43, %v194
    %196 = vmatpush.msra.mxu0 %v195
    %v197 = vand.u32 %v42, 4294901760
    %v198 = vsub.f32 %v42, %v197
    %199 = vmatpush.msra.mxu0 %v198
    %v200 = vand.u32 %v41, 4294901760
    %v201 = vsub.f32 %v41, %v200
    %202 = vmatpush.msra.mxu0 %v201
    %v203 = vand.u32 %v40, 4294901760
    %v204 = vsub.f32 %v40, %v203
    %205 = vmatpush.msra.mxu0 %v204
    %v206 = vand.u32 %v39, 4294901760
    %v207 = vsub.f32 %v39, %v206
    %208 = vmatpush.msra.mxu0 %v207
    %v209 = vand.u32 %v38, 4294901760
    %v210 = vsub.f32 %v38, %v209
    %211 = vmatpush.msra.mxu0 %v210
    %v212 = vand.u32 %v37, 4294901760
    %v213 = vsub.f32 %v37, %v212
    %214 = vmatpush.msra.mxu0 %v213
    %v215 = vand.u32 %v36, 4294901760
    %v216 = vsub.f32 %v36, %v215
    %217 = vmatpush.msra.mxu0 %v216
    %v218 = vand.u32 %v35, 4294901760
    %v219 = vsub.f32 %v35, %v218
    %220 = vmatpush.msra.mxu0 %v219
    %v221 = vand.u32 %v34, 4294901760
    %v222 = vsub.f32 %v34, %v221
    %223 = vmatpush.msra.mxu0 %v222
    %v224 = vand.u32 %v33, 4294901760
    %v225 = vsub.f32 %v33, %v224
    %226 = vmatpush.msra.mxu0 %v225
    %v227 = vand.u32 %v32, 4294901760
    %v228 = vsub.f32 %v32, %v227
    %229 = vmatpush.msra.mxu0 %v228
    %v230 = vand.u32 %v31, 4294901760
    %v231 = vsub.f32 %v31, %v230
    %232 = vmatpush.msra.mxu0 %v231
    %v233 = vand.u32 %v30, 4294901760
    %v234 = vsub.f32 %v30, %v233
    %235 = vmatpush.msra.mxu0 %v234
    %v236 = vand.u32 %v29, 4294901760
    %v237 = vsub.f32 %v29, %v236
    %238 = vmatmul.f32.gmra.mxu0 %v237
    %v239 = vpop.f32.mrf.mxu0
    %v240 = vadd.f32 %v186, %v239
    %241 = vdwg.mxu0
    %v242 = vand.u32 %v45, 4294901760
    %243 = vmatpush.msra.mxu0 %v242
    %v244 = vand.u32 %v44, 4294901760
    %245 = vmatpush.msra.mxu0 %v244
    %v246 = vand.u32 %v43, 4294901760
    %247 = vmatpush.msra.mxu0 %v246
    %v248 = vand.u32 %v42, 4294901760
    %249 = vmatpush.msra.mxu0 %v248
    %v250 = vand.u32 %v41, 4294901760
    %251 = vmatpush.msra.mxu0 %v250
    %v252 = vand.u32 %v40, 4294901760
    %253 = vmatpush.msra.mxu0 %v252
    %v254 = vand.u32 %v39, 4294901760
    %255 = vmatpush.msra.mxu0 %v254
    %v256 = vand.u32 %v38, 4294901760
    %257 = vmatpush.msra.mxu0 %v256
    %v258 = vand.u32 %v37, 4294901760
    %259 = vmatpush.msra.mxu0 %v258
    %v260 = vand.u32 %v36, 4294901760
    %261 = vmatpush.msra.mxu0 %v260
    %v262 = vand.u32 %v35, 4294901760
    %263 = vmatpush.msra.mxu0 %v262
    %v264 = vand.u32 %v34, 4294901760
    %265 = vmatpush.msra.mxu0 %v264
    %v266 = vand.u32 %v33, 4294901760
    %267 = vmatpush.msra.mxu0 %v266
    %v268 = vand.u32 %v32, 4294901760
    %269 = vmatpush.msra.mxu0 %v268
    %v270 = vand.u32 %v31, 4294901760
    %271 = vmatpush.msra.mxu0 %v270
    %v272 = vand.u32 %v30, 4294901760
    %273 = vmatpush.msra.mxu0 %v272
    %v274 = vand.u32 %v29, 4294901760
    %v275 = vsub.f32 %v29, %v274
    %v276 = vand.u32 %v275, 4294901760
    %277 = vmatmul.f32.gmra.mxu0 %v276
    %v278 = vpop.f32.mrf.mxu0
    %v279 = vadd.f32 %v240, %v278
    %280 = vdwg.mxu0
    %v281 = vand.u32 %v45, 4294901760
    %v282 = vsub.f32 %v45, %v281
    %v283 = vand.u32 %v282, 4294901760
    %284 = vmatpush.msra.mxu0 %v283
    %v285 = vand.u32 %v44, 4294901760
    %v286 = vsub.f32 %v44, %v285
    %v287 = vand.u32 %v286, 4294901760
    %288 = vmatpush.msra.mxu0 %v287
    %v289 = vand.u32 %v43, 4294901760
    %v290 = vsub.f32 %v43, %v289
    %v291 = vand.u32 %v290, 4294901760
    %292 = vmatpush.msra.mxu0 %v291
    %v293 = vand.u32 %v42, 4294901760
    %v294 = vsub.f32 %v42, %v293
    %v295 = vand.u32 %v294, 4294901760
    %296 = vmatpush.msra.mxu0 %v295
    %v297 = vand.u32 %v41, 4294901760
    %v298 = vsub.f32 %v41, %v297
    %v299 = vand.u32 %v298, 4294901760
    %300 = vmatpush.msra.mxu0 %v299
    %v301 = vand.u32 %v40, 4294901760
    %v302 = vsub.f32 %v40, %v301
    %v303 = vand.u32 %v302, 4294901760
    %304 = vmatpush.msra.mxu0 %v303
    %v305 = vand.u32 %v39, 4294901760
    %v306 = vsub.f32 %v39, %v305
    %v307 = vand.u32 %v306, 4294901760
    %308 = vmatpush.msra.mxu0 %v307
    %v309 = vand.u32 %v38, 4294901760
    %v310 = vsub.f32 %v38, %v309
    %v311 = vand.u32 %v310, 4294901760
    %312 = vmatpush.msra.mxu0 %v311
    %v313 = vand.u32 %v37, 4294901760
    %v314 = vsub.f32 %v37, %v313
    %v315 = vand.u32 %v314, 4294901760
    %316 = vmatpush.msra.mxu0 %v315
    %v317 = vand.u32 %v36, 4294901760
    %v318 = vsub.f32 %v36, %v317
    %v319 = vand.u32 %v318, 4294901760
    %320 = vmatpush.msra.mxu0 %v319
    %v321 = vand.u32 %v35, 4294901760
    %v322 = vsub.f32 %v35, %v321
    %v323 = vand.u32 %v322, 4294901760
    %324 = vmatpush.msra.mxu0 %v323
    %v325 = vand.u32 %v34, 4294901760
    %v326 = vsub.f32 %v34, %v325
    %v327 = vand.u32 %v326, 4294901760
    %328 = vmatpush.msra.mxu0 %v327
    %v329 = vand.u32 %v33, 4294901760
    %v330 = vsub.f32 %v33, %v329
    %v331 = vand.u32 %v330, 4294901760
    %332 = vmatpush.msra.mxu0 %v331
    %v333 = vand.u32 %v32, 4294901760
    %v334 = vsub.f32 %v32, %v333
    %v335 = vand.u32 %v334, 4294901760
    %336 = vmatpush.msra.mxu0 %v335
    %v337 = vand.u32 %v31, 4294901760
    %v338 = vsub.f32 %v31, %v337
    %v339 = vand.u32 %v338, 4294901760
    %340 = vmatpush.msra.mxu0 %v339
    %v341 = vand.u32 %v30, 4294901760
    %v342 = vsub.f32 %v30, %v341
    %v343 = vand.u32 %v342, 4294901760
    %344 = vmatpush.msra.mxu0 %v343
    %v345 = vand.u32 %v29, 4294901760
    %346 = vmatmul.f32.gmra.mxu0 %v345
    %v347 = vpop.f32.mrf.mxu0
    %v348 = vadd.f32 %v279, %v347
    %349 = vdwg.mxu0
    %v350 = vand.u32 %v45, 4294901760
    %351 = vmatpush.msra.mxu0 %v350
    %v352 = vand.u32 %v44, 4294901760
    %353 = vmatpush.msra.mxu0 %v352
    %v354 = vand.u32 %v43, 4294901760
    %355 = vmatpush.msra.mxu0 %v354
    %v356 = vand.u32 %v42, 4294901760
    %357 = vmatpush.msra.mxu0 %v356
    %v358 = vand.u32 %v41, 4294901760
    %359 = vmatpush.msra.mxu0 %v358
    %v360 = vand.u32 %v40, 4294901760
    %361 = vmatpush.msra.mxu0 %v360
    %v362 = vand.u32 %v39, 4294901760
    %363 = vmatpush.msra.mxu0 %v362
    %v364 = vand.u32 %v38, 4294901760
    %365 = vmatpush.msra.mxu0 %v364
    %v366 = vand.u32 %v37, 4294901760
    %367 = vmatpush.msra.mxu0 %v366
    %v368 = vand.u32 %v36, 4294901760
    %369 = vmatpush.msra.mxu0 %v368
    %v370 = vand.u32 %v35, 4294901760
    %371 = vmatpush.msra.mxu0 %v370
    %v372 = vand.u32 %v34, 4294901760
    %373 = vmatpush.msra.mxu0 %v372
    %v374 = vand.u32 %v33, 4294901760
    %375 = vmatpush.msra.mxu0 %v374
    %v376 = vand.u32 %v32, 4294901760
    %377 = vmatpush.msra.mxu0 %v376
    %v378 = vand.u32 %v31, 4294901760
    %379 = vmatpush.msra.mxu0 %v378
    %v380 = vand.u32 %v30, 4294901760
    %381 = vmatpush.msra.mxu0 %v380
    %v382 = vand.u32 %v29, 4294901760
    %383 = vmatmul.f32.gmra.mxu0 %v382
    %v384 = vpop.f32.mrf.mxu0
    %v385 = vadd.f32 %v348, %v384
    %386 = vdwg.mxu0
    %v387 = vld [vmem:[%s2] sm:$0xff]
    %v388 = vld [vmem:[%s2 + $0x8] sm:$0xff]
    %v389 = vld [vmem:[%s2 + $0x10] sm:$0xff]
    %v390 = vld [vmem:[%s2 + $0x18] sm:$0xff]
    %v391 = vtanh.pop %v385
    %vm392 = vcmask 261120
    %v394 = vsel %vm392, %v391, 0
    %396 = vmatpush.msra.mxu0 0.0
    %397 = vmatpush.msra.mxu0 0.0
    %398 = vmatpush.msra.mxu0 0.0
    %399 = vmatpush.msra.mxu0 0.0
    %400 = vmatpush.msra.mxu0 0.0
    %401 = vmatpush.msra.mxu0 0.0
    %402 = vmatpush.msra.mxu0 0.0
    %403 = vmatpush.msra.mxu0 0.0
    %404 = vmatpush.msra.mxu0 0.0
    %405 = vmatpush.msra.mxu0 0.0
    %406 = vmatpush.msra.mxu0 0.0
    %407 = vmatpush.msra.mxu0 0.0
    %v408 = vand.u32 %v390, 4294901760
    %409 = vmatpush.msra.mxu0 %v408
    %v410 = vand.u32 %v389, 4294901760
    %411 = vmatpush.msra.mxu0 %v410
    %v412 = vand.u32 %v388, 4294901760
    %413 = vmatpush.msra.mxu0 %v412
    %v414 = vand.u32 %v387, 4294901760
    %415 = vmatpush.msra.mxu0 %v414
    %v416 = vand.u32 %v394, 4294901760
    %v417 = vsub.f32 %v394, %v416
    %v418 = vand.u32 %v417, 4294901760
    %v419 = vsub.f32 %v417, %v418
    %v420 = vand.u32 %v419, 4294901760
    %421 = vmatmul.f32.gmra.mxu0 %v420
    %v422 = vpop.f32.mrf.mxu0
    %v423 = vadd.f32 0.0, %v422
    %424 = vdwg.mxu0
    %425 = vmatpush.msra.mxu0 0.0
    %426 = vmatpush.msra.mxu0 0.0
    %427 = vmatpush.msra.mxu0 0.0
    %428 = vmatpush.msra.mxu0 0.0
    %429 = vmatpush.msra.mxu0 0.0
    %430 = vmatpush.msra.mxu0 0.0
    %431 = vmatpush.msra.mxu0 0.0
    %432 = vmatpush.msra.mxu0 0.0
    %433 = vmatpush.msra.mxu0 0.0
    %434 = vmatpush.msra.mxu0 0.0
    %435 = vmatpush.msra.mxu0 0.0
    %436 = vmatpush.msra.mxu0 0.0
    %v437 = vand.u32 %v390, 4294901760
    %v438 = vsub.f32 %v390, %v437
    %v439 = vand.u32 %v438, 4294901760
    %v440 = vsub.f32 %v438, %v439
    %v441 = vand.u32 %v440, 4294901760
    %442 = vmatpush.msra.mxu0 %v441
    %v443 = vand.u32 %v389, 4294901760
    %v444 = vsub.f32 %v389, %v443
    %v445 = vand.u32 %v444, 4294901760
    %v446 = vsub.f32 %v444, %v445
    %v447 = vand.u32 %v446, 4294901760
    %448 = vmatpush.msra.mxu0 %v447
    %v449 = vand.u32 %v388, 4294901760
    %v450 = vsub.f32 %v388, %v449
    %v451 = vand.u32 %v450, 4294901760
    %v452 = vsub.f32 %v450, %v451
    %v453 = vand.u32 %v452, 4294901760
    %454 = vmatpush.msra.mxu0 %v453
    %v455 = vand.u32 %v387, 4294901760
    %v456 = vsub.f32 %v387, %v455
    %v457 = vand.u32 %v456, 4294901760
    %v458 = vsub.f32 %v456, %v457
    %v459 = vand.u32 %v458, 4294901760
    %460 = vmatpush.msra.mxu0 %v459
    %v461 = vand.u32 %v394, 4294901760
    %462 = vmatmul.f32.gmra.mxu0 %v461
    %v463 = vpop.f32.mrf.mxu0
    %v464 = vadd.f32 %v423, %v463
    %465 = vdwg.mxu0
    %466 = vmatpush.msra.mxu0 0.0
    %467 = vmatpush.msra.mxu0 0.0
    %468 = vmatpush.msra.mxu0 0.0
    %469 = vmatpush.msra.mxu0 0.0
    %470 = vmatpush.msra.mxu0 0.0
    %471 = vmatpush.msra.mxu0 0.0
    %472 = vmatpush.msra.mxu0 0.0
    %473 = vmatpush.msra.mxu0 0.0
    %474 = vmatpush.msra.mxu0 0.0
    %475 = vmatpush.msra.mxu0 0.0
    %476 = vmatpush.msra.mxu0 0.0
    %477 = vmatpush.msra.mxu0 0.0
    %v478 = vand.u32 %v390, 4294901760
    %v479 = vsub.f32 %v390, %v478
    %480 = vmatpush.msra.mxu0 %v479
    %v481 = vand.u32 %v389, 4294901760
    %v482 = vsub.f32 %v389, %v481
    %483 = vmatpush.msra.mxu0 %v482
    %v484 = vand.u32 %v388, 4294901760
    %v485 = vsub.f32 %v388, %v484
    %486 = vmatpush.msra.mxu0 %v485
    %v487 = vand.u32 %v387, 4294901760
    %v488 = vsub.f32 %v387, %v487
    %489 = vmatpush.msra.mxu0 %v488
    %v490 = vand.u32 %v394, 4294901760
    %v491 = vsub.f32 %v394, %v490
    %492 = vmatmul.f32.gmra.mxu0 %v491
    %v493 = vpop.f32.mrf.mxu0
    %v494 = vadd.f32 %v464, %v493
    %495 = vdwg.mxu0
    %496 = vmatpush.msra.mxu0 0.0
    %497 = vmatpush.msra.mxu0 0.0
    %498 = vmatpush.msra.mxu0 0.0
    %499 = vmatpush.msra.mxu0 0.0
    %500 = vmatpush.msra.mxu0 0.0
    %501 = vmatpush.msra.mxu0 0.0
    %502 = vmatpush.msra.mxu0 0.0
    %503 = vmatpush.msra.mxu0 0.0
    %504 = vmatpush.msra.mxu0 0.0
    %505 = vmatpush.msra.mxu0 0.0
    %506 = vmatpush.msra.mxu0 0.0
    %507 = vmatpush.msra.mxu0 0.0
    %v508 = vand.u32 %v390, 4294901760
    %509 = vmatpush.msra.mxu0 %v508
    %v510 = vand.u32 %v389, 4294901760
    %511 = vmatpush.msra.mxu0 %v510
    %v512 = vand.u32 %v388, 4294901760
    %513 = vmatpush.msra.mxu0 %v512
    %v514 = vand.u32 %v387, 4294901760
    %515 = vmatpush.msra.mxu0 %v514
    %v516 = vand.u32 %v394, 4294901760
    %v517 = vsub.f32 %v394, %v516
    %v518 = vand.u32 %v517, 4294901760
    %519 = vmatmul.f32.gmra.mxu0 %v518
    %v520 = vpop.f32.mrf.mxu0
    %v521 = vadd.f32 %v494, %v520
    %522 = vdwg.mxu0
    %523 = vmatpush.msra.mxu0 0.0
    %524 = vmatpush.msra.mxu0 0.0
    %525 = vmatpush.msra.mxu0 0.0
    %526 = vmatpush.msra.mxu0 0.0
    %527 = vmatpush.msra.mxu0 0.0
    %528 = vmatpush.msra.mxu0 0.0
    %529 = vmatpush.msra.mxu0 0.0
    %530 = vmatpush.msra.mxu0 0.0
    %531 = vmatpush.msra.mxu0 0.0
    %532 = vmatpush.msra.mxu0 0.0
    %533 = vmatpush.msra.mxu0 0.0
    %534 = vmatpush.msra.mxu0 0.0
    %v535 = vand.u32 %v390, 4294901760
    %v536 = vsub.f32 %v390, %v535
    %v537 = vand.u32 %v536, 4294901760
    %538 = vmatpush.msra.mxu0 %v537
    %v539 = vand.u32 %v389, 4294901760
    %v540 = vsub.f32 %v389, %v539
    %v541 = vand.u32 %v540, 4294901760
    %542 = vmatpush.msra.mxu0 %v541
    %v543 = vand.u32 %v388, 4294901760
    %v544 = vsub.f32 %v388, %v543
    %v545 = vand.u32 %v544, 4294901760
    %546 = vmatpush.msra.mxu0 %v545
    %v547 = vand.u32 %v387, 4294901760
    %v548 = vsub.f32 %v387, %v547
    %v549 = vand.u32 %v548, 4294901760
    %550 = vmatpush.msra.mxu0 %v549
    %v551 = vand.u32 %v394, 4294901760
    %552 = vmatmul.f32.gmra.mxu0 %v551
    %v553 = vpop.f32.mrf.mxu0
    %v554 = vadd.f32 %v521, %v553
    %555 = vdwg.mxu0
    %556 = vmatpush.msra.mxu0 0.0
    %557 = vmatpush.msra.mxu0 0.0
    %558 = vmatpush.msra.mxu0 0.0
    %559 = vmatpush.msra.mxu0 0.0
    %560 = vmatpush.msra.mxu0 0.0
    %561 = vmatpush.msra.mxu0 0.0
    %562 = vmatpush.msra.mxu0 0.0
    %563 = vmatpush.msra.mxu0 0.0
    %564 = vmatpush.msra.mxu0 0.0
    %565 = vmatpush.msra.mxu0 0.0
    %566 = vmatpush.msra.mxu0 0.0
    %567 = vmatpush.msra.mxu0 0.0
    %v568 = vand.u32 %v390, 4294901760
    %569 = vmatpush.msra.mxu0 %v568
    %v570 = vand.u32 %v389, 4294901760
    %571 = vmatpush.msra.mxu0 %v570
    %v572 = vand.u32 %v388, 4294901760
    %573 = vmatpush.msra.mxu0 %v572
    %v574 = vand.u32 %v387, 4294901760
    %575 = vmatpush.msra.mxu0 %v574
    %v576 = vand.u32 %v394, 4294901760
    %577 = vmatmul.f32.gmra.mxu0 %v576
    %v578 = vpop.f32.mrf.mxu0
    %v579 = vadd.f32 %v554, %v578
    %580 = vdwg.mxu0
    %v582 = vrot.slane %v579, 7
    %v584 = vadd.f32 %v385, %v582
    %v585 = vtanh.pop %v584
    %v587 = vrot.slane %v585, 1
    %v588 = vsel %vm392, %v587, 0
    %590 = vmatpush.msra.mxu0 0.0
    %591 = vmatpush.msra.mxu0 0.0
    %592 = vmatpush.msra.mxu0 0.0
    %593 = vmatpush.msra.mxu0 0.0
    %594 = vmatpush.msra.mxu0 0.0
    %595 = vmatpush.msra.mxu0 0.0
    %596 = vmatpush.msra.mxu0 0.0
    %597 = vmatpush.msra.mxu0 0.0
    %598 = vmatpush.msra.mxu0 0.0
    %599 = vmatpush.msra.mxu0 0.0
    %600 = vmatpush.msra.mxu0 0.0
    %601 = vmatpush.msra.mxu0 0.0
    %v602 = vand.u32 %v390, 4294901760
    %603 = vmatpush.msra.mxu0 %v602
    %v604 = vand.u32 %v389, 4294901760
    %605 = vmatpush.msra.mxu0 %v604
    %v606 = vand.u32 %v388, 4294901760
    %607 = vmatpush.msra.mxu0 %v606
    %v608 = vand.u32 %v387, 4294901760
    %609 = vmatpush.msra.mxu0 %v608
    %v610 = vand.u32 %v588, 4294901760
    %v611 = vsub.f32 %v588, %v610
    %v612 = vand.u32 %v611, 4294901760
    %v613 = vsub.f32 %v611, %v612
    %v614 = vand.u32 %v613, 4294901760
    %615 = vmatmul.f32.gmra.mxu0 %v614
    %v616 = vpop.f32.mrf.mxu0
    %v617 = vadd.f32 0.0, %v616
    %618 = vdwg.mxu0
    %619 = vmatpush.msra.mxu0 0.0
    %620 = vmatpush.msra.mxu0 0.0
    %621 = vmatpush.msra.mxu0 0.0
    %622 = vmatpush.msra.mxu0 0.0
    %623 = vmatpush.msra.mxu0 0.0
    %624 = vmatpush.msra.mxu0 0.0
    %625 = vmatpush.msra.mxu0 0.0
    %626 = vmatpush.msra.mxu0 0.0
    %627 = vmatpush.msra.mxu0 0.0
    %628 = vmatpush.msra.mxu0 0.0
    %629 = vmatpush.msra.mxu0 0.0
    %630 = vmatpush.msra.mxu0 0.0
    %v631 = vand.u32 %v390, 4294901760
    %v632 = vsub.f32 %v390, %v631
    %v633 = vand.u32 %v632, 4294901760
    %v634 = vsub.f32 %v632, %v633
    %v635 = vand.u32 %v634, 4294901760
    %636 = vmatpush.msra.mxu0 %v635
    %v637 = vand.u32 %v389, 4294901760
    %v638 = vsub.f32 %v389, %v637
    %v639 = vand.u32 %v638, 4294901760
    %v640 = vsub.f32 %v638, %v639
    %v641 = vand.u32 %v640, 4294901760
    %642 = vmatpush.msra.mxu0 %v641
    %v643 = vand.u32 %v388, 4294901760
    %v644 = vsub.f32 %v388, %v643
    %v645 = vand.u32 %v644, 4294901760
    %v646 = vsub.f32 %v644, %v645
    %v647 = vand.u32 %v646, 4294901760
    %648 = vmatpush.msra.mxu0 %v647
    %v649 = vand.u32 %v387, 4294901760
    %v650 = vsub.f32 %v387, %v649
    %v651 = vand.u32 %v650, 4294901760
    %v652 = vsub.f32 %v650, %v651
    %v653 = vand.u32 %v652, 4294901760
    %654 = vmatpush.msra.mxu0 %v653
    %v655 = vand.u32 %v588, 4294901760
    %656 = vmatmul.f32.gmra.mxu0 %v655
    %v657 = vpop.f32.mrf.mxu0
    %v658 = vadd.f32 %v617, %v657
    %659 = vdwg.mxu0
    %660 = vmatpush.msra.mxu0 0.0
    %661 = vmatpush.msra.mxu0 0.0
    %662 = vmatpush.msra.mxu0 0.0
    %663 = vmatpush.msra.mxu0 0.0
    %664 = vmatpush.msra.mxu0 0.0
    %665 = vmatpush.msra.mxu0 0.0
    %666 = vmatpush.msra.mxu0 0.0
    %667 = vmatpush.msra.mxu0 0.0
    %668 = vmatpush.msra.mxu0 0.0
    %669 = vmatpush.msra.mxu0 0.0
    %670 = vmatpush.msra.mxu0 0.0
    %671 = vmatpush.msra.mxu0 0.0
    %v672 = vand.u32 %v390, 4294901760
    %v673 = vsub.f32 %v390, %v672
    %674 = vmatpush.msra.mxu0 %v673
    %v675 = vand.u32 %v389, 4294901760
    %v676 = vsub.f32 %v389, %v675
    %677 = vmatpush.msra.mxu0 %v676
    %v678 = vand.u32 %v388, 4294901760
    %v679 = vsub.f32 %v388, %v678
    %680 = vmatpush.msra.mxu0 %v679
    %v681 = vand.u32 %v387, 4294901760
    %v682 = vsub.f32 %v387, %v681
    %683 = vmatpush.msra.mxu0 %v682
    %v684 = vand.u32 %v588, 4294901760
    %v685 = vsub.f32 %v588, %v684
    %686 = vmatmul.f32.gmra.mxu0 %v685
    %v687 = vpop.f32.mrf.mxu0
    %v688 = vadd.f32 %v658, %v687
    %689 = vdwg.mxu0
    %690 = vmatpush.msra.mxu0 0.0
    %691 = vmatpush.msra.mxu0 0.0
    %692 = vmatpush.msra.mxu0 0.0
    %693 = vmatpush.msra.mxu0 0.0
    %694 = vmatpush.msra.mxu0 0.0
    %695 = vmatpush.msra.mxu0 0.0
    %696 = vmatpush.msra.mxu0 0.0
    %697 = vmatpush.msra.mxu0 0.0
    %698 = vmatpush.msra.mxu0 0.0
    %699 = vmatpush.msra.mxu0 0.0
    %700 = vmatpush.msra.mxu0 0.0
    %701 = vmatpush.msra.mxu0 0.0
    %v702 = vand.u32 %v390, 4294901760
    %703 = vmatpush.msra.mxu0 %v702
    %v704 = vand.u32 %v389, 4294901760
    %705 = vmatpush.msra.mxu0 %v704
    %v706 = vand.u32 %v388, 4294901760
    %707 = vmatpush.msra.mxu0 %v706
    %v708 = vand.u32 %v387, 4294901760
    %709 = vmatpush.msra.mxu0 %v708
    %v710 = vand.u32 %v588, 4294901760
    %v711 = vsub.f32 %v588, %v710
    %v712 = vand.u32 %v711, 4294901760
    %713 = vmatmul.f32.gmra.mxu0 %v712
    %v714 = vpop.f32.mrf.mxu0
    %v715 = vadd.f32 %v688, %v714
    %716 = vdwg.mxu0
    %717 = vmatpush.msra.mxu0 0.0
    %718 = vmatpush.msra.mxu0 0.0
    %719 = vmatpush.msra.mxu0 0.0
    %720 = vmatpush.msra.mxu0 0.0
    %721 = vmatpush.msra.mxu0 0.0
    %722 = vmatpush.msra.mxu0 0.0
    %723 = vmatpush.msra.mxu0 0.0
    %724 = vmatpush.msra.mxu0 0.0
    %725 = vmatpush.msra.mxu0 0.0
    %726 = vmatpush.msra.mxu0 0.0
    %727 = vmatpush.msra.mxu0 0.0
    %728 = vmatpush.msra.mxu0 0.0
    %v729 = vand.u32 %v390, 4294901760
    %v730 = vsub.f32 %v390, %v729
    %v731 = vand.u32 %v730, 4294901760
    %732 = vmatpush.msra.mxu0 %v731
    %v733 = vand.u32 %v389, 4294901760
    %v734 = vsub.f32 %v389, %v733
    %v735 = vand.u32 %v734, 4294901760
    %736 = vmatpush.msra.mxu0 %v735
    %v737 = vand.u32 %v388, 4294901760
    %v738 = vsub.f32 %v388, %v737
    %v739 = vand.u32 %v738, 4294901760
    %740 = vmatpush.msra.mxu0 %v739
    %v741 = vand.u32 %v387, 4294901760
    %v742 = vsub.f32 %v387, %v741
    %v743 = vand.u32 %v742, 4294901760
    %744 = vmatpush.msra.mxu0 %v743
    %v745 = vand.u32 %v588, 4294901760
    %746 = vmatmul.f32.gmra.mxu0 %v745
    %v747 = vpop.f32.mrf.mxu0
    %v748 = vadd.f32 %v715, %v747
    %749 = vdwg.mxu0
    %750 = vmatpush.msra.mxu0 0.0
    %751 = vmatpush.msra.mxu0 0.0
    %752 = vmatpush.msra.mxu0 0.0
    %753 = vmatpush.msra.mxu0 0.0
    %754 = vmatpush.msra.mxu0 0.0
    %755 = vmatpush.msra.mxu0 0.0
    %756 = vmatpush.msra.mxu0 0.0
    %757 = vmatpush.msra.mxu0 0.0
    %758 = vmatpush.msra.mxu0 0.0
    %759 = vmatpush.msra.mxu0 0.0
    %760 = vmatpush.msra.mxu0 0.0
    %761 = vmatpush.msra.mxu0 0.0
    %v762 = vand.u32 %v390, 4294901760
    %763 = vmatpush.msra.mxu0 %v762
    %v764 = vand.u32 %v389, 4294901760
    %765 = vmatpush.msra.mxu0 %v764
    %v766 = vand.u32 %v388, 4294901760
    %767 = vmatpush.msra.mxu0 %v766
    %v768 = vand.u32 %v387, 4294901760
    %769 = vmatpush.msra.mxu0 %v768
    %v770 = vand.u32 %v588, 4294901760
    %771 = vmatmul.f32.gmra.mxu0 %v770
    %v772 = vpop.f32.mrf.mxu0
    %v773 = vadd.f32 %v748, %v772
    %774 = vdwg.mxu0
    %v776 = vrot.slane %v773, 6
    %v778 = vadd.f32 %v385, %v776
    %v779 = vtanh.pop %v778
    %v781 = vrot.slane %v779, 2
    %v782 = vsel %vm392, %v781, 0
    %784 = vmatpush.msra.mxu0 0.0
    %785 = vmatpush.msra.mxu0 0.0
    %786 = vmatpush.msra.mxu0 0.0
    %787 = vmatpush.msra.mxu0 0.0
    %788 = vmatpush.msra.mxu0 0.0
    %789 = vmatpush.msra.mxu0 0.0
    %790 = vmatpush.msra.mxu0 0.0
    %791 = vmatpush.msra.mxu0 0.0
    %792 = vmatpush.msra.mxu0 0.0
    %793 = vmatpush.msra.mxu0 0.0
    %794 = vmatpush.msra.mxu0 0.0
    %795 = vmatpush.msra.mxu0 0.0
    %v796 = vand.u32 %v390, 4294901760
    %797 = vmatpush.msra.mxu0 %v796
    %v798 = vand.u32 %v389, 4294901760
    %799 = vmatpush.msra.mxu0 %v798
    %v800 = vand.u32 %v388, 4294901760
    %801 = vmatpush.msra.mxu0 %v800
    %v802 = vand.u32 %v387, 4294901760
    %803 = vmatpush.msra.mxu0 %v802
    %v804 = vand.u32 %v782, 4294901760
    %v805 = vsub.f32 %v782, %v804
    %v806 = vand.u32 %v805, 4294901760
    %v807 = vsub.f32 %v805, %v806
    %v808 = vand.u32 %v807, 4294901760
    %809 = vmatmul.f32.gmra.mxu0 %v808
    %v810 = vpop.f32.mrf.mxu0
    %v811 = vadd.f32 0.0, %v810
    %812 = vdwg.mxu0
    %813 = vmatpush.msra.mxu0 0.0
    %814 = vmatpush.msra.mxu0 0.0
    %815 = vmatpush.msra.mxu0 0.0
    %816 = vmatpush.msra.mxu0 0.0
    %817 = vmatpush.msra.mxu0 0.0
    %818 = vmatpush.msra.mxu0 0.0
    %819 = vmatpush.msra.mxu0 0.0
    %820 = vmatpush.msra.mxu0 0.0
    %821 = vmatpush.msra.mxu0 0.0
    %822 = vmatpush.msra.mxu0 0.0
    %823 = vmatpush.msra.mxu0 0.0
    %824 = vmatpush.msra.mxu0 0.0
    %v825 = vand.u32 %v390, 4294901760
    %v826 = vsub.f32 %v390, %v825
    %v827 = vand.u32 %v826, 4294901760
    %v828 = vsub.f32 %v826, %v827
    %v829 = vand.u32 %v828, 4294901760
    %830 = vmatpush.msra.mxu0 %v829
    %v831 = vand.u32 %v389, 4294901760
    %v832 = vsub.f32 %v389, %v831
    %v833 = vand.u32 %v832, 4294901760
    %v834 = vsub.f32 %v832, %v833
    %v835 = vand.u32 %v834, 4294901760
    %836 = vmatpush.msra.mxu0 %v835
    %v837 = vand.u32 %v388, 4294901760
    %v838 = vsub.f32 %v388, %v837
    %v839 = vand.u32 %v838, 4294901760
    %v840 = vsub.f32 %v838, %v839
    %v841 = vand.u32 %v840, 4294901760
    %842 = vmatpush.msra.mxu0 %v841
    %v843 = vand.u32 %v387, 4294901760
    %v844 = vsub.f32 %v387, %v843
    %v845 = vand.u32 %v844, 4294901760
    %v846 = vsub.f32 %v844, %v845
    %v847 = vand.u32 %v846, 4294901760
    %848 = vmatpush.msra.mxu0 %v847
    %v849 = vand.u32 %v782, 4294901760
    %850 = vmatmul.f32.gmra.mxu0 %v849
    %v851 = vpop.f32.mrf.mxu0
    %v852 = vadd.f32 %v811, %v851
    %853 = vdwg.mxu0
    %854 = vmatpush.msra.mxu0 0.0
    %855 = vmatpush.msra.mxu0 0.0
    %856 = vmatpush.msra.mxu0 0.0
    %857 = vmatpush.msra.mxu0 0.0
    %858 = vmatpush.msra.mxu0 0.0
    %859 = vmatpush.msra.mxu0 0.0
    %860 = vmatpush.msra.mxu0 0.0
    %861 = vmatpush.msra.mxu0 0.0
    %862 = vmatpush.msra.mxu0 0.0
    %863 = vmatpush.msra.mxu0 0.0
    %864 = vmatpush.msra.mxu0 0.0
    %865 = vmatpush.msra.mxu0 0.0
    %v866 = vand.u32 %v390, 4294901760
    %v867 = vsub.f32 %v390, %v866
    %868 = vmatpush.msra.mxu0 %v867
    %v869 = vand.u32 %v389, 4294901760
    %v870 = vsub.f32 %v389, %v869
    %871 = vmatpush.msra.mxu0 %v870
    %v872 = vand.u32 %v388, 4294901760
    %v873 = vsub.f32 %v388, %v872
    %874 = vmatpush.msra.mxu0 %v873
    %v875 = vand.u32 %v387, 4294901760
    %v876 = vsub.f32 %v387, %v875
    %877 = vmatpush.msra.mxu0 %v876
    %v878 = vand.u32 %v782, 4294901760
    %v879 = vsub.f32 %v782, %v878
    %880 = vmatmul.f32.gmra.mxu0 %v879
    %v881 = vpop.f32.mrf.mxu0
    %v882 = vadd.f32 %v852, %v881
    %883 = vdwg.mxu0
    %884 = vmatpush.msra.mxu0 0.0
    %885 = vmatpush.msra.mxu0 0.0
    %886 = vmatpush.msra.mxu0 0.0
    %887 = vmatpush.msra.mxu0 0.0
    %888 = vmatpush.msra.mxu0 0.0
    %889 = vmatpush.msra.mxu0 0.0
    %890 = vmatpush.msra.mxu0 0.0
    %891 = vmatpush.msra.mxu0 0.0
    %892 = vmatpush.msra.mxu0 0.0
    %893 = vmatpush.msra.mxu0 0.0
    %894 = vmatpush.msra.mxu0 0.0
    %895 = vmatpush.msra.mxu0 0.0
    %v896 = vand.u32 %v390, 4294901760
    %897 = vmatpush.msra.mxu0 %v896
    %v898 = vand.u32 %v389, 4294901760
    %899 = vmatpush.msra.mxu0 %v898
    %v900 = vand.u32 %v388, 4294901760
    %901 = vmatpush.msra.mxu0 %v900
    %v902 = vand.u32 %v387, 4294901760
    %903 = vmatpush.msra.mxu0 %v902
    %v904 = vand.u32 %v782, 4294901760
    %v905 = vsub.f32 %v782, %v904
    %v906 = vand.u32 %v905, 4294901760
    %907 = vmatmul.f32.gmra.mxu0 %v906
    %v908 = vpop.f32.mrf.mxu0
    %v909 = vadd.f32 %v882, %v908
    %910 = vdwg.mxu0
    %911 = vmatpush.msra.mxu0 0.0
    %912 = vmatpush.msra.mxu0 0.0
    %913 = vmatpush.msra.mxu0 0.0
    %914 = vmatpush.msra.mxu0 0.0
    %915 = vmatpush.msra.mxu0 0.0
    %916 = vmatpush.msra.mxu0 0.0
    %917 = vmatpush.msra.mxu0 0.0
    %918 = vmatpush.msra.mxu0 0.0
    %919 = vmatpush.msra.mxu0 0.0
    %920 = vmatpush.msra.mxu0 0.0
    %921 = vmatpush.msra.mxu0 0.0
    %922 = vmatpush.msra.mxu0 0.0
    %v923 = vand.u32 %v390, 4294901760
    %v924 = vsub.f32 %v390, %v923
    %v925 = vand.u32 %v924, 4294901760
    %926 = vmatpush.msra.mxu0 %v925
    %v927 = vand.u32 %v389, 4294901760
    %v928 = vsub.f32 %v389, %v927
    %v929 = vand.u32 %v928, 4294901760
    %930 = vmatpush.msra.mxu0 %v929
    %v931 = vand.u32 %v388, 4294901760
    %v932 = vsub.f32 %v388, %v931
    %v933 = vand.u32 %v932, 4294901760
    %934 = vmatpush.msra.mxu0 %v933
    %v935 = vand.u32 %v387, 4294901760
    %v936 = vsub.f32 %v387, %v935
    %v937 = vand.u32 %v936, 4294901760
    %938 = vmatpush.msra.mxu0 %v937
    %v939 = vand.u32 %v782, 4294901760
    %940 = vmatmul.f32.gmra.mxu0 %v939
    %v941 = vpop.f32.mrf.mxu0
    %v942 = vadd.f32 %v909, %v941
    %943 = vdwg.mxu0
    %944 = vmatpush.msra.mxu0 0.0
    %945 = vmatpush.msra.mxu0 0.0
    %946 = vmatpush.msra.mxu0 0.0
    %947 = vmatpush.msra.mxu0 0.0
    %948 = vmatpush.msra.mxu0 0.0
    %949 = vmatpush.msra.mxu0 0.0
    %950 = vmatpush.msra.mxu0 0.0
    %951 = vmatpush.msra.mxu0 0.0
    %952 = vmatpush.msra.mxu0 0.0
    %953 = vmatpush.msra.mxu0 0.0
    %954 = vmatpush.msra.mxu0 0.0
    %955 = vmatpush.msra.mxu0 0.0
    %v956 = vand.u32 %v390, 4294901760
    %957 = vmatpush.msra.mxu0 %v956
    %v958 = vand.u32 %v389, 4294901760
    %959 = vmatpush.msra.mxu0 %v958
    %v960 = vand.u32 %v388, 4294901760
    %961 = vmatpush.msra.mxu0 %v960
    %v962 = vand.u32 %v387, 4294901760
    %963 = vmatpush.msra.mxu0 %v962
    %v964 = vand.u32 %v782, 4294901760
    %965 = vmatmul.f32.gmra.mxu0 %v964
    %v966 = vpop.f32.mrf.mxu0
    %v967 = vadd.f32 %v942, %v966
    %968 = vdwg.mxu0
    %v970 = vrot.slane %v967, 5
    %v972 = vadd.f32 %v385, %v970
    %v973 = vtanh.pop %v972
    %v975 = vrot.slane %v973, 3
    %v976 = vsel %vm392, %v975, 0
    %978 = vmatpush.msra.mxu0 0.0
    %979 = vmatpush.msra.mxu0 0.0
    %980 = vmatpush.msra.mxu0 0.0
    %981 = vmatpush.msra.mxu0 0.0
    %982 = vmatpush.msra.mxu0 0.0
    %983 = vmatpush.msra.mxu0 0.0
    %984 = vmatpush.msra.mxu0 0.0
    %985 = vmatpush.msra.mxu0 0.0
    %986 = vmatpush.msra.mxu0 0.0
    %987 = vmatpush.msra.mxu0 0.0
    %988 = vmatpush.msra.mxu0 0.0
    %989 = vmatpush.msra.mxu0 0.0
    %v990 = vand.u32 %v390, 4294901760
    %991 = vmatpush.msra.mxu0 %v990
    %v992 = vand.u32 %v389, 4294901760
    %993 = vmatpush.msra.mxu0 %v992
    %v994 = vand.u32 %v388, 4294901760
    %995 = vmatpush.msra.mxu0 %v994
    %v996 = vand.u32 %v387, 4294901760
    %997 = vmatpush.msra.mxu0 %v996
    %v998 = vand.u32 %v976, 4294901760
    %v999 = vsub.f32 %v976, %v998
    %v1000 = vand.u32 %v999, 4294901760
    %v1001 = vsub.f32 %v999, %v1000
    %v1002 = vand.u32 %v1001, 4294901760
    %1003 = vmatmul.f32.gmra.mxu0 %v1002
    %v1004 = vpop.f32.mrf.mxu0
    %v1005 = vadd.f32 0.0, %v1004
    %1006 = vdwg.mxu0
    %1007 = vmatpush.msra.mxu0 0.0
    %1008 = vmatpush.msra.mxu0 0.0
    %1009 = vmatpush.msra.mxu0 0.0
    %1010 = vmatpush.msra.mxu0 0.0
    %1011 = vmatpush.msra.mxu0 0.0
    %1012 = vmatpush.msra.mxu0 0.0
    %1013 = vmatpush.msra.mxu0 0.0
    %1014 = vmatpush.msra.mxu0 0.0
    %1015 = vmatpush.msra.mxu0 0.0
    %1016 = vmatpush.msra.mxu0 0.0
    %1017 = vmatpush.msra.mxu0 0.0
    %1018 = vmatpush.msra.mxu0 0.0
    %v1019 = vand.u32 %v390, 4294901760
    %v1020 = vsub.f32 %v390, %v1019
    %v1021 = vand.u32 %v1020, 4294901760
    %v1022 = vsub.f32 %v1020, %v1021
    %v1023 = vand.u32 %v1022, 4294901760
    %1024 = vmatpush.msra.mxu0 %v1023
    %v1025 = vand.u32 %v389, 4294901760
    %v1026 = vsub.f32 %v389, %v1025
    %v1027 = vand.u32 %v1026, 4294901760
    %v1028 = vsub.f32 %v1026, %v1027
    %v1029 = vand.u32 %v1028, 4294901760
    %1030 = vmatpush.msra.mxu0 %v1029
    %v1031 = vand.u32 %v388, 4294901760
    %v1032 = vsub.f32 %v388, %v1031
    %v1033 = vand.u32 %v1032, 4294901760
    %v1034 = vsub.f32 %v1032, %v1033
    %v1035 = vand.u32 %v1034, 4294901760
    %1036 = vmatpush.msra.mxu0 %v1035
    %v1037 = vand.u32 %v387, 4294901760
    %v1038 = vsub.f32 %v387, %v1037
    %v1039 = vand.u32 %v1038, 4294901760
    %v1040 = vsub.f32 %v1038, %v1039
    %v1041 = vand.u32 %v1040, 4294901760
    %1042 = vmatpush.msra.mxu0 %v1041
    %v1043 = vand.u32 %v976, 4294901760
    %1044 = vmatmul.f32.gmra.mxu0 %v1043
    %v1045 = vpop.f32.mrf.mxu0
    %v1046 = vadd.f32 %v1005, %v1045
    %1047 = vdwg.mxu0
    %1048 = vmatpush.msra.mxu0 0.0
    %1049 = vmatpush.msra.mxu0 0.0
    %1050 = vmatpush.msra.mxu0 0.0
    %1051 = vmatpush.msra.mxu0 0.0
    %1052 = vmatpush.msra.mxu0 0.0
    %1053 = vmatpush.msra.mxu0 0.0
    %1054 = vmatpush.msra.mxu0 0.0
    %1055 = vmatpush.msra.mxu0 0.0
    %1056 = vmatpush.msra.mxu0 0.0
    %1057 = vmatpush.msra.mxu0 0.0
    %1058 = vmatpush.msra.mxu0 0.0
    %1059 = vmatpush.msra.mxu0 0.0
    %v1060 = vand.u32 %v390, 4294901760
    %v1061 = vsub.f32 %v390, %v1060
    %1062 = vmatpush.msra.mxu0 %v1061
    %v1063 = vand.u32 %v389, 4294901760
    %v1064 = vsub.f32 %v389, %v1063
    %1065 = vmatpush.msra.mxu0 %v1064
    %v1066 = vand.u32 %v388, 4294901760
    %v1067 = vsub.f32 %v388, %v1066
    %1068 = vmatpush.msra.mxu0 %v1067
    %v1069 = vand.u32 %v387, 4294901760
    %v1070 = vsub.f32 %v387, %v1069
    %1071 = vmatpush.msra.mxu0 %v1070
    %v1072 = vand.u32 %v976, 4294901760
    %v1073 = vsub.f32 %v976, %v1072
    %1074 = vmatmul.f32.gmra.mxu0 %v1073
    %v1075 = vpop.f32.mrf.mxu0
    %v1076 = vadd.f32 %v1046, %v1075
    %1077 = vdwg.mxu0
    %1078 = vmatpush.msra.mxu0 0.0
    %1079 = vmatpush.msra.mxu0 0.0
    %1080 = vmatpush.msra.mxu0 0.0
    %1081 = vmatpush.msra.mxu0 0.0
    %1082 = vmatpush.msra.mxu0 0.0
    %1083 = vmatpush.msra.mxu0 0.0
    %1084 = vmatpush.msra.mxu0 0.0
    %1085 = vmatpush.msra.mxu0 0.0
    %1086 = vmatpush.msra.mxu0 0.0
    %1087 = vmatpush.msra.mxu0 0.0
    %1088 = vmatpush.msra.mxu0 0.0
    %1089 = vmatpush.msra.mxu0 0.0
    %v1090 = vand.u32 %v390, 4294901760
    %1091 = vmatpush.msra.mxu0 %v1090
    %v1092 = vand.u32 %v389, 4294901760
    %1093 = vmatpush.msra.mxu0 %v1092
    %v1094 = vand.u32 %v388, 4294901760
    %1095 = vmatpush.msra.mxu0 %v1094
    %v1096 = vand.u32 %v387, 4294901760
    %1097 = vmatpush.msra.mxu0 %v1096
    %v1098 = vand.u32 %v976, 4294901760
    %v1099 = vsub.f32 %v976, %v1098
    %v1100 = vand.u32 %v1099, 4294901760
    %1101 = vmatmul.f32.gmra.mxu0 %v1100
    %v1102 = vpop.f32.mrf.mxu0
    %v1103 = vadd.f32 %v1076, %v1102
    %1104 = vdwg.mxu0
    %1105 = vmatpush.msra.mxu0 0.0
    %1106 = vmatpush.msra.mxu0 0.0
    %1107 = vmatpush.msra.mxu0 0.0
    %1108 = vmatpush.msra.mxu0 0.0
    %1109 = vmatpush.msra.mxu0 0.0
    %1110 = vmatpush.msra.mxu0 0.0
    %1111 = vmatpush.msra.mxu0 0.0
    %1112 = vmatpush.msra.mxu0 0.0
    %1113 = vmatpush.msra.mxu0 0.0
    %1114 = vmatpush.msra.mxu0 0.0
    %1115 = vmatpush.msra.mxu0 0.0
    %1116 = vmatpush.msra.mxu0 0.0
    %v1117 = vand.u32 %v390, 4294901760
    %v1118 = vsub.f32 %v390, %v1117
    %v1119 = vand.u32 %v1118, 4294901760
    %1120 = vmatpush.msra.mxu0 %v1119
    %v1121 = vand.u32 %v389, 4294901760
    %v1122 = vsub.f32 %v389, %v1121
    %v1123 = vand.u32 %v1122, 4294901760
    %1124 = vmatpush.msra.mxu0 %v1123
    %v1125 = vand.u32 %v388, 4294901760
    %v1126 = vsub.f32 %v388, %v1125
    %v1127 = vand.u32 %v1126, 4294901760
    %1128 = vmatpush.msra.mxu0 %v1127
    %v1129 = vand.u32 %v387, 4294901760
    %v1130 = vsub.f32 %v387, %v1129
    %v1131 = vand.u32 %v1130, 4294901760
    %1132 = vmatpush.msra.mxu0 %v1131
    %v1133 = vand.u32 %v976, 4294901760
    %1134 = vmatmul.f32.gmra.mxu0 %v1133
    %v1135 = vpop.f32.mrf.mxu0
    %v1136 = vadd.f32 %v1103, %v1135
    %1137 = vdwg.mxu0
    %1138 = vmatpush.msra.mxu0 0.0
    %1139 = vmatpush.msra.mxu0 0.0
    %1140 = vmatpush.msra.mxu0 0.0
    %1141 = vmatpush.msra.mxu0 0.0
    %1142 = vmatpush.msra.mxu0 0.0
    %1143 = vmatpush.msra.mxu0 0.0
    %1144 = vmatpush.msra.mxu0 0.0
    %1145 = vmatpush.msra.mxu0 0.0
    %1146 = vmatpush.msra.mxu0 0.0
    %1147 = vmatpush.msra.mxu0 0.0
    %1148 = vmatpush.msra.mxu0 0.0
    %1149 = vmatpush.msra.mxu0 0.0
    %v1150 = vand.u32 %v390, 4294901760
    %1151 = vmatpush.msra.mxu0 %v1150
    %v1152 = vand.u32 %v389, 4294901760
    %1153 = vmatpush.msra.mxu0 %v1152
    %v1154 = vand.u32 %v388, 4294901760
    %1155 = vmatpush.msra.mxu0 %v1154
    %v1156 = vand.u32 %v387, 4294901760
    %1157 = vmatpush.msra.mxu0 %v1156
    %v1158 = vand.u32 %v976, 4294901760
    %1159 = vmatmul.f32.gmra.mxu0 %v1158
    %v1160 = vpop.f32.mrf.mxu0
    %v1161 = vadd.f32 %v1136, %v1160
    %1162 = vdwg.mxu0
    %v1164 = vrot.slane %v1161, 4
    %v1166 = vadd.f32 %v385, %v1164
    %v1167 = vtanh.pop %v1166
    %v1169 = vrot.slane %v1167, 4
    %v1170 = vsel %vm392, %v1169, 0
    %1172 = vmatpush.msra.mxu0 0.0
    %1173 = vmatpush.msra.mxu0 0.0
    %1174 = vmatpush.msra.mxu0 0.0
    %1175 = vmatpush.msra.mxu0 0.0
    %1176 = vmatpush.msra.mxu0 0.0
    %1177 = vmatpush.msra.mxu0 0.0
    %1178 = vmatpush.msra.mxu0 0.0
    %1179 = vmatpush.msra.mxu0 0.0
    %1180 = vmatpush.msra.mxu0 0.0
    %1181 = vmatpush.msra.mxu0 0.0
    %1182 = vmatpush.msra.mxu0 0.0
    %1183 = vmatpush.msra.mxu0 0.0
    %v1184 = vand.u32 %v390, 4294901760
    %1185 = vmatpush.msra.mxu0 %v1184
    %v1186 = vand.u32 %v389, 4294901760
    %1187 = vmatpush.msra.mxu0 %v1186
    %v1188 = vand.u32 %v388, 4294901760
    %1189 = vmatpush.msra.mxu0 %v1188
    %v1190 = vand.u32 %v387, 4294901760
    %1191 = vmatpush.msra.mxu0 %v1190
    %v1192 = vand.u32 %v1170, 4294901760
    %v1193 = vsub.f32 %v1170, %v1192
    %v1194 = vand.u32 %v1193, 4294901760
    %v1195 = vsub.f32 %v1193, %v1194
    %v1196 = vand.u32 %v1195, 4294901760
    %1197 = vmatmul.f32.gmra.mxu0 %v1196
    %v1198 = vpop.f32.mrf.mxu0
    %v1199 = vadd.f32 0.0, %v1198
    %1200 = vdwg.mxu0
    %1201 = vmatpush.msra.mxu0 0.0
    %1202 = vmatpush.msra.mxu0 0.0
    %1203 = vmatpush.msra.mxu0 0.0
    %1204 = vmatpush.msra.mxu0 0.0
    %1205 = vmatpush.msra.mxu0 0.0
    %1206 = vmatpush.msra.mxu0 0.0
    %1207 = vmatpush.msra.mxu0 0.0
    %1208 = vmatpush.msra.mxu0 0.0
    %1209 = vmatpush.msra.mxu0 0.0
    %1210 = vmatpush.msra.mxu0 0.0
    %1211 = vmatpush.msra.mxu0 0.0
    %1212 = vmatpush.msra.mxu0 0.0
    %v1213 = vand.u32 %v390, 4294901760
    %v1214 = vsub.f32 %v390, %v1213
    %v1215 = vand.u32 %v1214, 4294901760
    %v1216 = vsub.f32 %v1214, %v1215
    %v1217 = vand.u32 %v1216, 4294901760
    %1218 = vmatpush.msra.mxu0 %v1217
    %v1219 = vand.u32 %v389, 4294901760
    %v1220 = vsub.f32 %v389, %v1219
    %v1221 = vand.u32 %v1220, 4294901760
    %v1222 = vsub.f32 %v1220, %v1221
    %v1223 = vand.u32 %v1222, 4294901760
    %1224 = vmatpush.msra.mxu0 %v1223
    %v1225 = vand.u32 %v388, 4294901760
    %v1226 = vsub.f32 %v388, %v1225
    %v1227 = vand.u32 %v1226, 4294901760
    %v1228 = vsub.f32 %v1226, %v1227
    %v1229 = vand.u32 %v1228, 4294901760
    %1230 = vmatpush.msra.mxu0 %v1229
    %v1231 = vand.u32 %v387, 4294901760
    %v1232 = vsub.f32 %v387, %v1231
    %v1233 = vand.u32 %v1232, 4294901760
    %v1234 = vsub.f32 %v1232, %v1233
    %v1235 = vand.u32 %v1234, 4294901760
    %1236 = vmatpush.msra.mxu0 %v1235
    %v1237 = vand.u32 %v1170, 4294901760
    %1238 = vmatmul.f32.gmra.mxu0 %v1237
    %v1239 = vpop.f32.mrf.mxu0
    %v1240 = vadd.f32 %v1199, %v1239
    %1241 = vdwg.mxu0
    %1242 = vmatpush.msra.mxu0 0.0
    %1243 = vmatpush.msra.mxu0 0.0
    %1244 = vmatpush.msra.mxu0 0.0
    %1245 = vmatpush.msra.mxu0 0.0
    %1246 = vmatpush.msra.mxu0 0.0
    %1247 = vmatpush.msra.mxu0 0.0
    %1248 = vmatpush.msra.mxu0 0.0
    %1249 = vmatpush.msra.mxu0 0.0
    %1250 = vmatpush.msra.mxu0 0.0
    %1251 = vmatpush.msra.mxu0 0.0
    %1252 = vmatpush.msra.mxu0 0.0
    %1253 = vmatpush.msra.mxu0 0.0
    %v1254 = vand.u32 %v390, 4294901760
    %v1255 = vsub.f32 %v390, %v1254
    %1256 = vmatpush.msra.mxu0 %v1255
    %v1257 = vand.u32 %v389, 4294901760
    %v1258 = vsub.f32 %v389, %v1257
    %1259 = vmatpush.msra.mxu0 %v1258
    %v1260 = vand.u32 %v388, 4294901760
    %v1261 = vsub.f32 %v388, %v1260
    %1262 = vmatpush.msra.mxu0 %v1261
    %v1263 = vand.u32 %v387, 4294901760
    %v1264 = vsub.f32 %v387, %v1263
    %1265 = vmatpush.msra.mxu0 %v1264
    %v1266 = vand.u32 %v1170, 4294901760
    %v1267 = vsub.f32 %v1170, %v1266
    %1268 = vmatmul.f32.gmra.mxu0 %v1267
    %v1269 = vpop.f32.mrf.mxu0
    %v1270 = vadd.f32 %v1240, %v1269
    %1271 = vdwg.mxu0
    %1272 = vmatpush.msra.mxu0 0.0
    %1273 = vmatpush.msra.mxu0 0.0
    %1274 = vmatpush.msra.mxu0 0.0
    %1275 = vmatpush.msra.mxu0 0.0
    %1276 = vmatpush.msra.mxu0 0.0
    %1277 = vmatpush.msra.mxu0 0.0
    %1278 = vmatpush.msra.mxu0 0.0
    %1279 = vmatpush.msra.mxu0 0.0
    %1280 = vmatpush.msra.mxu0 0.0
    %1281 = vmatpush.msra.mxu0 0.0
    %1282 = vmatpush.msra.mxu0 0.0
    %1283 = vmatpush.msra.mxu0 0.0
    %v1284 = vand.u32 %v390, 4294901760
    %1285 = vmatpush.msra.mxu0 %v1284
    %v1286 = vand.u32 %v389, 4294901760
    %1287 = vmatpush.msra.mxu0 %v1286
    %v1288 = vand.u32 %v388, 4294901760
    %1289 = vmatpush.msra.mxu0 %v1288
    %v1290 = vand.u32 %v387, 4294901760
    %1291 = vmatpush.msra.mxu0 %v1290
    %v1292 = vand.u32 %v1170, 4294901760
    %v1293 = vsub.f32 %v1170, %v1292
    %v1294 = vand.u32 %v1293, 4294901760
    %1295 = vmatmul.f32.gmra.mxu0 %v1294
    %v1296 = vpop.f32.mrf.mxu0
    %v1297 = vadd.f32 %v1270, %v1296
    %1298 = vdwg.mxu0
    %1299 = vmatpush.msra.mxu0 0.0
    %1300 = vmatpush.msra.mxu0 0.0
    %1301 = vmatpush.msra.mxu0 0.0
    %1302 = vmatpush.msra.mxu0 0.0
    %1303 = vmatpush.msra.mxu0 0.0
    %1304 = vmatpush.msra.mxu0 0.0
    %1305 = vmatpush.msra.mxu0 0.0
    %1306 = vmatpush.msra.mxu0 0.0
    %1307 = vmatpush.msra.mxu0 0.0
    %1308 = vmatpush.msra.mxu0 0.0
    %1309 = vmatpush.msra.mxu0 0.0
    %1310 = vmatpush.msra.mxu0 0.0
    %v1311 = vand.u32 %v390, 4294901760
    %v1312 = vsub.f32 %v390, %v1311
    %v1313 = vand.u32 %v1312, 4294901760
    %1314 = vmatpush.msra.mxu0 %v1313
    %v1315 = vand.u32 %v389, 4294901760
    %v1316 = vsub.f32 %v389, %v1315
    %v1317 = vand.u32 %v1316, 4294901760
    %1318 = vmatpush.msra.mxu0 %v1317
    %v1319 = vand.u32 %v388, 4294901760
    %v1320 = vsub.f32 %v388, %v1319
    %v1321 = vand.u32 %v1320, 4294901760
    %1322 = vmatpush.msra.mxu0 %v1321
    %v1323 = vand.u32 %v387, 4294901760
    %v1324 = vsub.f32 %v387, %v1323
    %v1325 = vand.u32 %v1324, 4294901760
    %1326 = vmatpush.msra.mxu0 %v1325
    %v1327 = vand.u32 %v1170, 4294901760
    %1328 = vmatmul.f32.gmra.mxu0 %v1327
    %v1329 = vpop.f32.mrf.mxu0
    %v1330 = vadd.f32 %v1297, %v1329
    %1331 = vdwg.mxu0
    %1332 = vmatpush.msra.mxu0 0.0
    %1333 = vmatpush.msra.mxu0 0.0
    %1334 = vmatpush.msra.mxu0 0.0
    %1335 = vmatpush.msra.mxu0 0.0
    %1336 = vmatpush.msra.mxu0 0.0
    %1337 = vmatpush.msra.mxu0 0.0
    %1338 = vmatpush.msra.mxu0 0.0
    %1339 = vmatpush.msra.mxu0 0.0
    %1340 = vmatpush.msra.mxu0 0.0
    %1341 = vmatpush.msra.mxu0 0.0
    %1342 = vmatpush.msra.mxu0 0.0
    %1343 = vmatpush.msra.mxu0 0.0
    %v1344 = vand.u32 %v390, 4294901760
    %1345 = vmatpush.msra.mxu0 %v1344
    %v1346 = vand.u32 %v389, 4294901760
    %1347 = vmatpush.msra.mxu0 %v1346
    %v1348 = vand.u32 %v388, 4294901760
    %1349 = vmatpush.msra.mxu0 %v1348
    %v1350 = vand.u32 %v387, 4294901760
    %1351 = vmatpush.msra.mxu0 %v1350
    %v1352 = vand.u32 %v1170, 4294901760
    %1353 = vmatmul.f32.gmra.mxu0 %v1352
    %v1354 = vpop.f32.mrf.mxu0
    %v1355 = vadd.f32 %v1330, %v1354
    %1356 = vdwg.mxu0
    %v1358 = vrot.slane %v1355, 3
    %v1360 = vadd.f32 %v385, %v1358
    %v1361 = vtanh.pop %v1360
    %v1363 = vrot.slane %v1361, 5
    %v1364 = vsel %vm392, %v1363, 0
    %1366 = vmatpush.msra.mxu0 0.0
    %1367 = vmatpush.msra.mxu0 0.0
    %1368 = vmatpush.msra.mxu0 0.0
    %1369 = vmatpush.msra.mxu0 0.0
    %1370 = vmatpush.msra.mxu0 0.0
    %1371 = vmatpush.msra.mxu0 0.0
    %1372 = vmatpush.msra.mxu0 0.0
    %1373 = vmatpush.msra.mxu0 0.0
    %1374 = vmatpush.msra.mxu0 0.0
    %1375 = vmatpush.msra.mxu0 0.0
    %1376 = vmatpush.msra.mxu0 0.0
    %1377 = vmatpush.msra.mxu0 0.0
    %v1378 = vand.u32 %v390, 4294901760
    %1379 = vmatpush.msra.mxu0 %v1378
    %v1380 = vand.u32 %v389, 4294901760
    %1381 = vmatpush.msra.mxu0 %v1380
    %v1382 = vand.u32 %v388, 4294901760
    %1383 = vmatpush.msra.mxu0 %v1382
    %v1384 = vand.u32 %v387, 4294901760
    %1385 = vmatpush.msra.mxu0 %v1384
    %v1386 = vand.u32 %v1364, 4294901760
    %v1387 = vsub.f32 %v1364, %v1386
    %v1388 = vand.u32 %v1387, 4294901760
    %v1389 = vsub.f32 %v1387, %v1388
    %v1390 = vand.u32 %v1389, 4294901760
    %1391 = vmatmul.f32.gmra.mxu0 %v1390
    %v1392 = vpop.f32.mrf.mxu0
    %v1393 = vadd.f32 0.0, %v1392
    %1394 = vdwg.mxu0
    %1395 = vmatpush.msra.mxu0 0.0
    %1396 = vmatpush.msra.mxu0 0.0
    %1397 = vmatpush.msra.mxu0 0.0
    %1398 = vmatpush.msra.mxu0 0.0
    %1399 = vmatpush.msra.mxu0 0.0
    %1400 = vmatpush.msra.mxu0 0.0
    %1401 = vmatpush.msra.mxu0 0.0
    %1402 = vmatpush.msra.mxu0 0.0
    %1403 = vmatpush.msra.mxu0 0.0
    %1404 = vmatpush.msra.mxu0 0.0
    %1405 = vmatpush.msra.mxu0 0.0
    %1406 = vmatpush.msra.mxu0 0.0
    %v1407 = vand.u32 %v390, 4294901760
    %v1408 = vsub.f32 %v390, %v1407
    %v1409 = vand.u32 %v1408, 4294901760
    %v1410 = vsub.f32 %v1408, %v1409
    %v1411 = vand.u32 %v1410, 4294901760
    %1412 = vmatpush.msra.mxu0 %v1411
    %v1413 = vand.u32 %v389, 4294901760
    %v1414 = vsub.f32 %v389, %v1413
    %v1415 = vand.u32 %v1414, 4294901760
    %v1416 = vsub.f32 %v1414, %v1415
    %v1417 = vand.u32 %v1416, 4294901760
    %1418 = vmatpush.msra.mxu0 %v1417
    %v1419 = vand.u32 %v388, 4294901760
    %v1420 = vsub.f32 %v388, %v1419
    %v1421 = vand.u32 %v1420, 4294901760
    %v1422 = vsub.f32 %v1420, %v1421
    %v1423 = vand.u32 %v1422, 4294901760
    %1424 = vmatpush.msra.mxu0 %v1423
    %v1425 = vand.u32 %v387, 4294901760
    %v1426 = vsub.f32 %v387, %v1425
    %v1427 = vand.u32 %v1426, 4294901760
    %v1428 = vsub.f32 %v1426, %v1427
    %v1429 = vand.u32 %v1428, 4294901760
    %1430 = vmatpush.msra.mxu0 %v1429
    %v1431 = vand.u32 %v1364, 4294901760
    %1432 = vmatmul.f32.gmra.mxu0 %v1431
    %v1433 = vpop.f32.mrf.mxu0
    %v1434 = vadd.f32 %v1393, %v1433
    %1435 = vdwg.mxu0
    %1436 = vmatpush.msra.mxu0 0.0
    %1437 = vmatpush.msra.mxu0 0.0
    %1438 = vmatpush.msra.mxu0 0.0
    %1439 = vmatpush.msra.mxu0 0.0
    %1440 = vmatpush.msra.mxu0 0.0
    %1441 = vmatpush.msra.mxu0 0.0
    %1442 = vmatpush.msra.mxu0 0.0
    %1443 = vmatpush.msra.mxu0 0.0
    %1444 = vmatpush.msra.mxu0 0.0
    %1445 = vmatpush.msra.mxu0 0.0
    %1446 = vmatpush.msra.mxu0 0.0
    %1447 = vmatpush.msra.mxu0 0.0
    %v1448 = vand.u32 %v390, 4294901760
    %v1449 = vsub.f32 %v390, %v1448
    %1450 = vmatpush.msra.mxu0 %v1449
    %v1451 = vand.u32 %v389, 4294901760
    %v1452 = vsub.f32 %v389, %v1451
    %1453 = vmatpush.msra.mxu0 %v1452
    %v1454 = vand.u32 %v388, 4294901760
    %v1455 = vsub.f32 %v388, %v1454
    %1456 = vmatpush.msra.mxu0 %v1455
    %v1457 = vand.u32 %v387, 4294901760
    %v1458 = vsub.f32 %v387, %v1457
    %1459 = vmatpush.msra.mxu0 %v1458
    %v1460 = vand.u32 %v1364, 4294901760
    %v1461 = vsub.f32 %v1364, %v1460
    %1462 = vmatmul.f32.gmra.mxu0 %v1461
    %v1463 = vpop.f32.mrf.mxu0
    %v1464 = vadd.f32 %v1434, %v1463
    %1465 = vdwg.mxu0
    %1466 = vmatpush.msra.mxu0 0.0
    %1467 = vmatpush.msra.mxu0 0.0
    %1468 = vmatpush.msra.mxu0 0.0
    %1469 = vmatpush.msra.mxu0 0.0
    %1470 = vmatpush.msra.mxu0 0.0
    %1471 = vmatpush.msra.mxu0 0.0
    %1472 = vmatpush.msra.mxu0 0.0
    %1473 = vmatpush.msra.mxu0 0.0
    %1474 = vmatpush.msra.mxu0 0.0
    %1475 = vmatpush.msra.mxu0 0.0
    %1476 = vmatpush.msra.mxu0 0.0
    %1477 = vmatpush.msra.mxu0 0.0
    %v1478 = vand.u32 %v390, 4294901760
    %1479 = vmatpush.msra.mxu0 %v1478
    %v1480 = vand.u32 %v389, 4294901760
    %1481 = vmatpush.msra.mxu0 %v1480
    %v1482 = vand.u32 %v388, 4294901760
    %1483 = vmatpush.msra.mxu0 %v1482
    %v1484 = vand.u32 %v387, 4294901760
    %1485 = vmatpush.msra.mxu0 %v1484
    %v1486 = vand.u32 %v1364, 4294901760
    %v1487 = vsub.f32 %v1364, %v1486
    %v1488 = vand.u32 %v1487, 4294901760
    %1489 = vmatmul.f32.gmra.mxu0 %v1488
    %v1490 = vpop.f32.mrf.mxu0
    %v1491 = vadd.f32 %v1464, %v1490
    %1492 = vdwg.mxu0
    %1493 = vmatpush.msra.mxu0 0.0
    %1494 = vmatpush.msra.mxu0 0.0
    %1495 = vmatpush.msra.mxu0 0.0
    %1496 = vmatpush.msra.mxu0 0.0
    %1497 = vmatpush.msra.mxu0 0.0
    %1498 = vmatpush.msra.mxu0 0.0
    %1499 = vmatpush.msra.mxu0 0.0
    %1500 = vmatpush.msra.mxu0 0.0
    %1501 = vmatpush.msra.mxu0 0.0
    %1502 = vmatpush.msra.mxu0 0.0
    %1503 = vmatpush.msra.mxu0 0.0
    %1504 = vmatpush.msra.mxu0 0.0
    %v1505 = vand.u32 %v390, 4294901760
    %v1506 = vsub.f32 %v390, %v1505
    %v1507 = vand.u32 %v1506, 4294901760
    %1508 = vmatpush.msra.mxu0 %v1507
    %v1509 = vand.u32 %v389, 4294901760
    %v1510 = vsub.f32 %v389, %v1509
    %v1511 = vand.u32 %v1510, 4294901760
    %1512 = vmatpush.msra.mxu0 %v1511
    %v1513 = vand.u32 %v388, 4294901760
    %v1514 = vsub.f32 %v388, %v1513
    %v1515 = vand.u32 %v1514, 4294901760
    %1516 = vmatpush.msra.mxu0 %v1515
    %v1517 = vand.u32 %v387, 4294901760
    %v1518 = vsub.f32 %v387, %v1517
    %v1519 = vand.u32 %v1518, 4294901760
    %1520 = vmatpush.msra.mxu0 %v1519
    %v1521 = vand.u32 %v1364, 4294901760
    %1522 = vmatmul.f32.gmra.mxu0 %v1521
    %v1523 = vpop.f32.mrf.mxu0
    %v1524 = vadd.f32 %v1491, %v1523
    %1525 = vdwg.mxu0
    %1526 = vmatpush.msra.mxu0 0.0
    %1527 = vmatpush.msra.mxu0 0.0
    %1528 = vmatpush.msra.mxu0 0.0
    %1529 = vmatpush.msra.mxu0 0.0
    %1530 = vmatpush.msra.mxu0 0.0
    %1531 = vmatpush.msra.mxu0 0.0
    %1532 = vmatpush.msra.mxu0 0.0
    %1533 = vmatpush.msra.mxu0 0.0
    %1534 = vmatpush.msra.mxu0 0.0
    %1535 = vmatpush.msra.mxu0 0.0
    %1536 = vmatpush.msra.mxu0 0.0
    %1537 = vmatpush.msra.mxu0 0.0
    %v1538 = vand.u32 %v390, 4294901760
    %1539 = vmatpush.msra.mxu0 %v1538
    %v1540 = vand.u32 %v389, 4294901760
    %1541 = vmatpush.msra.mxu0 %v1540
    %v1542 = vand.u32 %v388, 4294901760
    %1543 = vmatpush.msra.mxu0 %v1542
    %v1544 = vand.u32 %v387, 4294901760
    %1545 = vmatpush.msra.mxu0 %v1544
    %v1546 = vand.u32 %v1364, 4294901760
    %1547 = vmatmul.f32.gmra.mxu0 %v1546
    %v1548 = vpop.f32.mrf.mxu0
    %v1549 = vadd.f32 %v1524, %v1548
    %1550 = vdwg.mxu0
    %v1552 = vrot.slane %v1549, 2
    %v1554 = vadd.f32 %v385, %v1552
    %v1555 = vtanh.pop %v1554
    %v1557 = vrot.slane %v1555, 6
    %v1558 = vsel %vm392, %v1557, 0
    %1560 = vmatpush.msra.mxu0 0.0
    %1561 = vmatpush.msra.mxu0 0.0
    %1562 = vmatpush.msra.mxu0 0.0
    %1563 = vmatpush.msra.mxu0 0.0
    %1564 = vmatpush.msra.mxu0 0.0
    %1565 = vmatpush.msra.mxu0 0.0
    %1566 = vmatpush.msra.mxu0 0.0
    %1567 = vmatpush.msra.mxu0 0.0
    %1568 = vmatpush.msra.mxu0 0.0
    %1569 = vmatpush.msra.mxu0 0.0
    %1570 = vmatpush.msra.mxu0 0.0
    %1571 = vmatpush.msra.mxu0 0.0
    %v1572 = vand.u32 %v390, 4294901760
    %1573 = vmatpush.msra.mxu0 %v1572
    %v1574 = vand.u32 %v389, 4294901760
    %1575 = vmatpush.msra.mxu0 %v1574
    %v1576 = vand.u32 %v388, 4294901760
    %1577 = vmatpush.msra.mxu0 %v1576
    %v1578 = vand.u32 %v387, 4294901760
    %1579 = vmatpush.msra.mxu0 %v1578
    %v1580 = vand.u32 %v1558, 4294901760
    %v1581 = vsub.f32 %v1558, %v1580
    %v1582 = vand.u32 %v1581, 4294901760
    %v1583 = vsub.f32 %v1581, %v1582
    %v1584 = vand.u32 %v1583, 4294901760
    %1585 = vmatmul.f32.gmra.mxu0 %v1584
    %v1586 = vpop.f32.mrf.mxu0
    %v1587 = vadd.f32 0.0, %v1586
    %1588 = vdwg.mxu0
    %1589 = vmatpush.msra.mxu0 0.0
    %1590 = vmatpush.msra.mxu0 0.0
    %1591 = vmatpush.msra.mxu0 0.0
    %1592 = vmatpush.msra.mxu0 0.0
    %1593 = vmatpush.msra.mxu0 0.0
    %1594 = vmatpush.msra.mxu0 0.0
    %1595 = vmatpush.msra.mxu0 0.0
    %1596 = vmatpush.msra.mxu0 0.0
    %1597 = vmatpush.msra.mxu0 0.0
    %1598 = vmatpush.msra.mxu0 0.0
    %1599 = vmatpush.msra.mxu0 0.0
    %1600 = vmatpush.msra.mxu0 0.0
    %v1601 = vand.u32 %v390, 4294901760
    %v1602 = vsub.f32 %v390, %v1601
    %v1603 = vand.u32 %v1602, 4294901760
    %v1604 = vsub.f32 %v1602, %v1603
    %v1605 = vand.u32 %v1604, 4294901760
    %1606 = vmatpush.msra.mxu0 %v1605
    %v1607 = vand.u32 %v389, 4294901760
    %v1608 = vsub.f32 %v389, %v1607
    %v1609 = vand.u32 %v1608, 4294901760
    %v1610 = vsub.f32 %v1608, %v1609
    %v1611 = vand.u32 %v1610, 4294901760
    %1612 = vmatpush.msra.mxu0 %v1611
    %v1613 = vand.u32 %v388, 4294901760
    %v1614 = vsub.f32 %v388, %v1613
    %v1615 = vand.u32 %v1614, 4294901760
    %v1616 = vsub.f32 %v1614, %v1615
    %v1617 = vand.u32 %v1616, 4294901760
    %1618 = vmatpush.msra.mxu0 %v1617
    %v1619 = vand.u32 %v387, 4294901760
    %v1620 = vsub.f32 %v387, %v1619
    %v1621 = vand.u32 %v1620, 4294901760
    %v1622 = vsub.f32 %v1620, %v1621
    %v1623 = vand.u32 %v1622, 4294901760
    %1624 = vmatpush.msra.mxu0 %v1623
    %v1625 = vand.u32 %v1558, 4294901760
    %1626 = vmatmul.f32.gmra.mxu0 %v1625
    %v1627 = vpop.f32.mrf.mxu0
    %v1628 = vadd.f32 %v1587, %v1627
    %1629 = vdwg.mxu0
    %1630 = vmatpush.msra.mxu0 0.0
    %1631 = vmatpush.msra.mxu0 0.0
    %1632 = vmatpush.msra.mxu0 0.0
    %1633 = vmatpush.msra.mxu0 0.0
    %1634 = vmatpush.msra.mxu0 0.0
    %1635 = vmatpush.msra.mxu0 0.0
    %1636 = vmatpush.msra.mxu0 0.0
    %1637 = vmatpush.msra.mxu0 0.0
    %1638 = vmatpush.msra.mxu0 0.0
    %1639 = vmatpush.msra.mxu0 0.0
    %1640 = vmatpush.msra.mxu0 0.0
    %1641 = vmatpush.msra.mxu0 0.0
    %v1642 = vand.u32 %v390, 4294901760
    %v1643 = vsub.f32 %v390, %v1642
    %1644 = vmatpush.msra.mxu0 %v1643
    %v1645 = vand.u32 %v389, 4294901760
    %v1646 = vsub.f32 %v389, %v1645
    %1647 = vmatpush.msra.mxu0 %v1646
    %v1648 = vand.u32 %v388, 4294901760
    %v1649 = vsub.f32 %v388, %v1648
    %1650 = vmatpush.msra.mxu0 %v1649
    %v1651 = vand.u32 %v387, 4294901760
    %v1652 = vsub.f32 %v387, %v1651
    %1653 = vmatpush.msra.mxu0 %v1652
    %v1654 = vand.u32 %v1558, 4294901760
    %v1655 = vsub.f32 %v1558, %v1654
    %1656 = vmatmul.f32.gmra.mxu0 %v1655
    %v1657 = vpop.f32.mrf.mxu0
    %v1658 = vadd.f32 %v1628, %v1657
    %1659 = vdwg.mxu0
    %1660 = vmatpush.msra.mxu0 0.0
    %1661 = vmatpush.msra.mxu0 0.0
    %1662 = vmatpush.msra.mxu0 0.0
    %1663 = vmatpush.msra.mxu0 0.0
    %1664 = vmatpush.msra.mxu0 0.0
    %1665 = vmatpush.msra.mxu0 0.0
    %1666 = vmatpush.msra.mxu0 0.0
    %1667 = vmatpush.msra.mxu0 0.0
    %1668 = vmatpush.msra.mxu0 0.0
    %1669 = vmatpush.msra.mxu0 0.0
    %1670 = vmatpush.msra.mxu0 0.0
    %1671 = vmatpush.msra.mxu0 0.0
    %v1672 = vand.u32 %v390, 4294901760
    %1673 = vmatpush.msra.mxu0 %v1672
    %v1674 = vand.u32 %v389, 4294901760
    %1675 = vmatpush.msra.mxu0 %v1674
    %v1676 = vand.u32 %v388, 4294901760
    %1677 = vmatpush.msra.mxu0 %v1676
    %v1678 = vand.u32 %v387, 4294901760
    %1679 = vmatpush.msra.mxu0 %v1678
    %v1680 = vand.u32 %v1558, 4294901760
    %v1681 = vsub.f32 %v1558, %v1680
    %v1682 = vand.u32 %v1681, 4294901760
    %1683 = vmatmul.f32.gmra.mxu0 %v1682
    %v1684 = vpop.f32.mrf.mxu0
    %v1685 = vadd.f32 %v1658, %v1684
    %1686 = vdwg.mxu0
    %1687 = vmatpush.msra.mxu0 0.0
    %1688 = vmatpush.msra.mxu0 0.0
    %1689 = vmatpush.msra.mxu0 0.0
    %1690 = vmatpush.msra.mxu0 0.0
    %1691 = vmatpush.msra.mxu0 0.0
    %1692 = vmatpush.msra.mxu0 0.0
    %1693 = vmatpush.msra.mxu0 0.0
    %1694 = vmatpush.msra.mxu0 0.0
    %1695 = vmatpush.msra.mxu0 0.0
    %1696 = vmatpush.msra.mxu0 0.0
    %1697 = vmatpush.msra.mxu0 0.0
    %1698 = vmatpush.msra.mxu0 0.0
    %v1699 = vand.u32 %v390, 4294901760
    %v1700 = vsub.f32 %v390, %v1699
    %v1701 = vand.u32 %v1700, 4294901760
    %1702 = vmatpush.msra.mxu0 %v1701
    %v1703 = vand.u32 %v389, 4294901760
    %v1704 = vsub.f32 %v389, %v1703
    %v1705 = vand.u32 %v1704, 4294901760
    %1706 = vmatpush.msra.mxu0 %v1705
    %v1707 = vand.u32 %v388, 4294901760
    %v1708 = vsub.f32 %v388, %v1707
    %v1709 = vand.u32 %v1708, 4294901760
    %1710 = vmatpush.msra.mxu0 %v1709
    %v1711 = vand.u32 %v387, 4294901760
    %v1712 = vsub.f32 %v387, %v1711
    %v1713 = vand.u32 %v1712, 4294901760
    %1714 = vmatpush.msra.mxu0 %v1713
    %v1715 = vand.u32 %v1558, 4294901760
    %1716 = vmatmul.f32.gmra.mxu0 %v1715
    %v1717 = vpop.f32.mrf.mxu0
    %v1718 = vadd.f32 %v1685, %v1717
    %1719 = vdwg.mxu0
    %1720 = vmatpush.msra.mxu0 0.0
    %1721 = vmatpush.msra.mxu0 0.0
    %1722 = vmatpush.msra.mxu0 0.0
    %1723 = vmatpush.msra.mxu0 0.0
    %1724 = vmatpush.msra.mxu0 0.0
    %1725 = vmatpush.msra.mxu0 0.0
    %1726 = vmatpush.msra.mxu0 0.0
    %1727 = vmatpush.msra.mxu0 0.0
    %1728 = vmatpush.msra.mxu0 0.0
    %1729 = vmatpush.msra.mxu0 0.0
    %1730 = vmatpush.msra.mxu0 0.0
    %1731 = vmatpush.msra.mxu0 0.0
    %v1732 = vand.u32 %v390, 4294901760
    %1733 = vmatpush.msra.mxu0 %v1732
    %v1734 = vand.u32 %v389, 4294901760
    %1735 = vmatpush.msra.mxu0 %v1734
    %v1736 = vand.u32 %v388, 4294901760
    %1737 = vmatpush.msra.mxu0 %v1736
    %v1738 = vand.u32 %v387, 4294901760
    %1739 = vmatpush.msra.mxu0 %v1738
    %v1740 = vand.u32 %v1558, 4294901760
    %1741 = vmatmul.f32.gmra.mxu0 %v1740
    %v1742 = vpop.f32.mrf.mxu0
    %v1743 = vadd.f32 %v1718, %v1742
    %1744 = vdwg.mxu0
    %v1746 = vrot.slane %v1743, 1
    %v1748 = vadd.f32 %v385, %v1746
    %v1749 = vtanh.pop %v1748
    %v1750 = vld [vmem:[%s3] sm:$0xff]
    %v1751 = vld [vmem:[%s3 + $0x8] sm:$0xff]
    %v1752 = vld [vmem:[%s3 + $0x10] sm:$0xff]
    %v1753 = vld [vmem:[%s3 + $0x18] sm:$0xff]
    %v1754 = vld [vmem:[%s4] sm:$0x1]
    %v1756 = vrot.slane %v1749, 7
    %v1757 = vsel %vm392, %v1756, 0
    %1759 = vmatpush.msra.mxu0 0.0
    %1760 = vmatpush.msra.mxu0 0.0
    %1761 = vmatpush.msra.mxu0 0.0
    %1762 = vmatpush.msra.mxu0 0.0
    %1763 = vmatpush.msra.mxu0 0.0
    %1764 = vmatpush.msra.mxu0 0.0
    %1765 = vmatpush.msra.mxu0 0.0
    %1766 = vmatpush.msra.mxu0 0.0
    %1767 = vmatpush.msra.mxu0 0.0
    %1768 = vmatpush.msra.mxu0 0.0
    %1769 = vmatpush.msra.mxu0 0.0
    %1770 = vmatpush.msra.mxu0 0.0
    %v1771 = vand.u32 %v1753, 4294901760
    %1772 = vmatpush.msra.mxu0 %v1771
    %v1773 = vand.u32 %v1752, 4294901760
    %1774 = vmatpush.msra.mxu0 %v1773
    %v1775 = vand.u32 %v1751, 4294901760
    %1776 = vmatpush.msra.mxu0 %v1775
    %v1777 = vand.u32 %v1750, 4294901760
    %1778 = vmatpush.msra.mxu0 %v1777
    %v1779 = vand.u32 %v1757, 4294901760
    %v1780 = vsub.f32 %v1757, %v1779
    %v1781 = vand.u32 %v1780, 4294901760
    %v1782 = vsub.f32 %v1780, %v1781
    %v1783 = vand.u32 %v1782, 4294901760
    %1784 = vmatmul.f32.gmra.mxu0 %v1783
    %v1785 = vpop.f32.mrf.mxu0
    %v1786 = vadd.f32 %v1754, %v1785
    %1787 = vdwg.mxu0
    %1788 = vmatpush.msra.mxu0 0.0
    %1789 = vmatpush.msra.mxu0 0.0
    %1790 = vmatpush.msra.mxu0 0.0
    %1791 = vmatpush.msra.mxu0 0.0
    %1792 = vmatpush.msra.mxu0 0.0
    %1793 = vmatpush.msra.mxu0 0.0
    %1794 = vmatpush.msra.mxu0 0.0
    %1795 = vmatpush.msra.mxu0 0.0
    %1796 = vmatpush.msra.mxu0 0.0
    %1797 = vmatpush.msra.mxu0 0.0
    %1798 = vmatpush.msra.mxu0 0.0
    %1799 = vmatpush.msra.mxu0 0.0
    %v1800 = vand.u32 %v1753, 4294901760
    %v1801 = vsub.f32 %v1753, %v1800
    %v1802 = vand.u32 %v1801, 4294901760
    %v1803 = vsub.f32 %v1801, %v1802
    %v1804 = vand.u32 %v1803, 4294901760
    %1805 = vmatpush.msra.mxu0 %v1804
    %v1806 = vand.u32 %v1752, 4294901760
    %v1807 = vsub.f32 %v1752, %v1806
    %v1808 = vand.u32 %v1807, 4294901760
    %v1809 = vsub.f32 %v1807, %v1808
    %v1810 = vand.u32 %v1809, 4294901760
    %1811 = vmatpush.msra.mxu0 %v1810
    %v1812 = vand.u32 %v1751, 4294901760
    %v1813 = vsub.f32 %v1751, %v1812
    %v1814 = vand.u32 %v1813, 4294901760
    %v1815 = vsub.f32 %v1813, %v1814
    %v1816 = vand.u32 %v1815, 4294901760
    %1817 = vmatpush.msra.mxu0 %v1816
    %v1818 = vand.u32 %v1750, 4294901760
    %v1819 = vsub.f32 %v1750, %v1818
    %v1820 = vand.u32 %v1819, 4294901760
    %v1821 = vsub.f32 %v1819, %v1820
    %v1822 = vand.u32 %v1821, 4294901760
    %1823 = vmatpush.msra.mxu0 %v1822
    %v1824 = vand.u32 %v1757, 4294901760
    %1825 = vmatmul.f32.gmra.mxu0 %v1824
    %v1826 = vpop.f32.mrf.mxu0
    %v1827 = vadd.f32 %v1786, %v1826
    %1828 = vdwg.mxu0
    %1829 = vmatpush.msra.mxu0 0.0
    %1830 = vmatpush.msra.mxu0 0.0
    %1831 = vmatpush.msra.mxu0 0.0
    %1832 = vmatpush.msra.mxu0 0.0
    %1833 = vmatpush.msra.mxu0 0.0
    %1834 = vmatpush.msra.mxu0 0.0
    %1835 = vmatpush.msra.mxu0 0.0
    %1836 = vmatpush.msra.mxu0 0.0
    %1837 = vmatpush.msra.mxu0 0.0
    %1838 = vmatpush.msra.mxu0 0.0
    %1839 = vmatpush.msra.mxu0 0.0
    %1840 = vmatpush.msra.mxu0 0.0
    %v1841 = vand.u32 %v1753, 4294901760
    %v1842 = vsub.f32 %v1753, %v1841
    %1843 = vmatpush.msra.mxu0 %v1842
    %v1844 = vand.u32 %v1752, 4294901760
    %v1845 = vsub.f32 %v1752, %v1844
    %1846 = vmatpush.msra.mxu0 %v1845
    %v1847 = vand.u32 %v1751, 4294901760
    %v1848 = vsub.f32 %v1751, %v1847
    %1849 = vmatpush.msra.mxu0 %v1848
    %v1850 = vand.u32 %v1750, 4294901760
    %v1851 = vsub.f32 %v1750, %v1850
    %1852 = vmatpush.msra.mxu0 %v1851
    %v1853 = vand.u32 %v1757, 4294901760
    %v1854 = vsub.f32 %v1757, %v1853
    %1855 = vmatmul.f32.gmra.mxu0 %v1854
    %v1856 = vpop.f32.mrf.mxu0
    %v1857 = vadd.f32 %v1827, %v1856
    %1858 = vdwg.mxu0
    %1859 = vmatpush.msra.mxu0 0.0
    %1860 = vmatpush.msra.mxu0 0.0
    %1861 = vmatpush.msra.mxu0 0.0
    %1862 = vmatpush.msra.mxu0 0.0
    %1863 = vmatpush.msra.mxu0 0.0
    %1864 = vmatpush.msra.mxu0 0.0
    %1865 = vmatpush.msra.mxu0 0.0
    %1866 = vmatpush.msra.mxu0 0.0
    %1867 = vmatpush.msra.mxu0 0.0
    %1868 = vmatpush.msra.mxu0 0.0
    %1869 = vmatpush.msra.mxu0 0.0
    %1870 = vmatpush.msra.mxu0 0.0
    %v1871 = vand.u32 %v1753, 4294901760
    %1872 = vmatpush.msra.mxu0 %v1871
    %v1873 = vand.u32 %v1752, 4294901760
    %1874 = vmatpush.msra.mxu0 %v1873
    %v1875 = vand.u32 %v1751, 4294901760
    %1876 = vmatpush.msra.mxu0 %v1875
    %v1877 = vand.u32 %v1750, 4294901760
    %1878 = vmatpush.msra.mxu0 %v1877
    %v1879 = vand.u32 %v1757, 4294901760
    %v1880 = vsub.f32 %v1757, %v1879
    %v1881 = vand.u32 %v1880, 4294901760
    %1882 = vmatmul.f32.gmra.mxu0 %v1881
    %v1883 = vpop.f32.mrf.mxu0
    %v1884 = vadd.f32 %v1857, %v1883
    %1885 = vdwg.mxu0
    %1886 = vmatpush.msra.mxu0 0.0
    %1887 = vmatpush.msra.mxu0 0.0
    %1888 = vmatpush.msra.mxu0 0.0
    %1889 = vmatpush.msra.mxu0 0.0
    %1890 = vmatpush.msra.mxu0 0.0
    %1891 = vmatpush.msra.mxu0 0.0
    %1892 = vmatpush.msra.mxu0 0.0
    %1893 = vmatpush.msra.mxu0 0.0
    %1894 = vmatpush.msra.mxu0 0.0
    %1895 = vmatpush.msra.mxu0 0.0
    %1896 = vmatpush.msra.mxu0 0.0
    %1897 = vmatpush.msra.mxu0 0.0
    %v1898 = vand.u32 %v1753, 4294901760
    %v1899 = vsub.f32 %v1753, %v1898
    %v1900 = vand.u32 %v1899, 4294901760
    %1901 = vmatpush.msra.mxu0 %v1900
    %v1902 = vand.u32 %v1752, 4294901760
    %v1903 = vsub.f32 %v1752, %v1902
    %v1904 = vand.u32 %v1903, 4294901760
    %1905 = vmatpush.msra.mxu0 %v1904
    %v1906 = vand.u32 %v1751, 4294901760
    %v1907 = vsub.f32 %v1751, %v1906
    %v1908 = vand.u32 %v1907, 4294901760
    %1909 = vmatpush.msra.mxu0 %v1908
    %v1910 = vand.u32 %v1750, 4294901760
    %v1911 = vsub.f32 %v1750, %v1910
    %v1912 = vand.u32 %v1911, 4294901760
    %1913 = vmatpush.msra.mxu0 %v1912
    %v1914 = vand.u32 %v1757, 4294901760
    %1915 = vmatmul.f32.gmra.mxu0 %v1914
    %v1916 = vpop.f32.mrf.mxu0
    %v1917 = vadd.f32 %v1884, %v1916
    %1918 = vdwg.mxu0
    %1919 = vmatpush.msra.mxu0 0.0
    %1920 = vmatpush.msra.mxu0 0.0
    %1921 = vmatpush.msra.mxu0 0.0
    %1922 = vmatpush.msra.mxu0 0.0
    %1923 = vmatpush.msra.mxu0 0.0
    %1924 = vmatpush.msra.mxu0 0.0
    %1925 = vmatpush.msra.mxu0 0.0
    %1926 = vmatpush.msra.mxu0 0.0
    %1927 = vmatpush.msra.mxu0 0.0
    %1928 = vmatpush.msra.mxu0 0.0
    %1929 = vmatpush.msra.mxu0 0.0
    %1930 = vmatpush.msra.mxu0 0.0
    %v1931 = vand.u32 %v1753, 4294901760
    %1932 = vmatpush.msra.mxu0 %v1931
    %v1933 = vand.u32 %v1752, 4294901760
    %1934 = vmatpush.msra.mxu0 %v1933
    %v1935 = vand.u32 %v1751, 4294901760
    %1936 = vmatpush.msra.mxu0 %v1935
    %v1937 = vand.u32 %v1750, 4294901760
    %1938 = vmatpush.msra.mxu0 %v1937
    %v1939 = vand.u32 %v1757, 4294901760
    %1940 = vmatmul.f32.gmra.mxu0 %v1939
    %v1941 = vpop.f32.mrf.mxu0
    %v1942 = vadd.f32 %v1917, %v1941
    %1943 = vdwg.mxu0
    %1944 = vst [vmem:[#allocation2] sm:$0x1] %v1942
    // Predicated region
    $region22: #{tpu_custom_call.1} parent=1 // pred_check
      _
    $region23: #{tpu_custom_call.1} parent=1 // pred_check_branch
      %1946 = sbr.rel (0) target = $region25
    $region24: #{tpu_custom_call.1} parent=1 // pred_region
      %1948 = vsyncadd [#allocation3], 0
      %s1950 = sshll.u32 [#allocation2], 4
      %s1951 = int_to_ptr.vmem [resolvable:$true] %s1950
      %s1952 = sshll.u32 %s5, 4
      %s1953 = int_to_ptr.hbm [resolvable:$true] %s1952
      %1955 = dma.vmem_to_hbm [thread:$0]  %s1951, 16, %s1953, [#allocation3]
    $region25: #{tpu_custom_call.1} parent=1 // pred_fallthru
      _
    // Predicated region
    $region26: #{tpu_custom_call.1} parent=1 // pred_check
      _
    $region27: #{tpu_custom_call.1} parent=1 // pred_check_branch
      %1957 = sbr.rel (0) target = $region29
    $region28: #{tpu_custom_call.1} parent=1 // pred_region
      %1959 = dma.done [#allocation3], 16
    $region29: #{tpu_custom_call.1} parent=1 // pred_fallthru
      _
    %1960 = vsyncpa [#allocation3], 1

</llo_original>
